<compile_context>
chip_gen: v7x
topology: tpu7x:2x2x1
jax: 0.10.0
libtpu: 0.0.40
codegen_flags: <defaults>
</compile_context>

<pallas_src>
import functools

import jax
import jax.numpy as jnp
from jax import lax
from jax.experimental import pallas as pl
from jax.experimental.pallas import tpu as pltpu

EPS = 1e-5          # nn.BatchNorm1d default eps
HALO = 16           # halo-block rows == native bf16 sublane tile
LANES = 128


# ----------------------------------------------------------------------------- utils
def _round_up(v, m):
    return (v + m - 1) // m * m


def _pad_last(a, c):
    pad = [(0, 0)] * (a.ndim - 1) + [(0, c - a.shape[-1])]
    return jnp.pad(a, pad)


def _pad_io(w, cin_p, cout_p):
    pad = [(0, 0)] * (w.ndim - 2) + [(0, cin_p - w.shape[-2]), (0, cout_p - w.shape[-1])]
    return jnp.pad(w, pad)


def _pick_tile(l_out, target):
    best = 0
    t = HALO
    while t <= min(target, l_out):
        if l_out % t == 0:
            best = t
        t += HALO
    if best == 0:
        raise ValueError(f"output length {l_out} must be a multiple of {HALO}")
    return best


def _vmem_limit_bytes():
    """Scoped-VMEM budget per generation: ~half of physical, capped at 64 MiB
    (-> 32 MiB on v7x's 64 MiB VMEM, 64 MiB on v5e/v6e's 128 MiB)."""
    try:
        cap = pltpu.get_tpu_info().vmem_capacity_bytes
    except Exception:                      # interpret mode / unknown chip
        cap = 128 * 1024 * 1024
    return int(min(64 * 1024 * 1024, max(16 * 1024 * 1024, cap // 2)))


def _default_tile_rows(l_out, cin_p, cmid_p, stride, vmem_limit):
    """Largest tile (multiple of 16 dividing l_out) whose per-pass working set stays
    well inside the scoped VMEM budget.  Bigger tiles -> closer to HBM roofline."""
    per_row = (2 * 2 * (stride * cin_p + 2 * cmid_p)      # double-buffered bf16 DMA tiles
               + 2 * 3 * cin_p + 4 * cmid_p)              # im2col patches + f32 accumulator
    target = max(HALO, min(2048, (vmem_limit // 2) // per_row))
    return _pick_tile(l_out, target)


# ----------------------------------------------------------- kernel-side helpers
def _shift_down(x, top_row):
    """out[j] = x[j-1] for j > 0, out[0] = top_row."""
    return jnp.concatenate([top_row, x[:-1, :]], axis=0)


def _shift_up(x, bottom_row):
    """out[j] = x[j+1] for j < rows-1, out[rows-1] = bottom_row."""
    return jnp.concatenate([x[1:, :], bottom_row], axis=0)


def _write_tile_stats(y_f32, st_ref):
    """Per-tile partial BN stats: row 0 = sum, row 1 = sum of squares, rows 2..7 zero."""
    c = y_f32.shape[-1]
    s = jnp.sum(y_f32, axis=0, keepdims=True)
    sq = jnp.sum(y_f32 * y_f32, axis=0, keepdims=True)
    st_ref[...] = jnp.concatenate([s, sq, jnp.zeros((6, c), jnp.float32)], axis=0)


# ------------------------------------------------------------------------- kernels
def _make_conv1_kernel(stride, cin_p, tile_axis, use_1x1conv, cdtype):
    lane_prev = (stride - 1) * cin_p       # lane offset of x[j*stride + stride - 1]

    def kernel(*refs):
        if use_1x1conv:
            (xm_ref, xl_ref, xr_ref, w_ref, b_ref, w3_ref, b3_ref,
             y_ref, res_ref, st_ref) = refs
        else:
            xm_ref, xl_ref, xr_ref, w_ref, b_ref, y_ref, st_ref = refs
        i = pl.program_id(tile_axis)
        nlt = pl.num_programs(tile_axis)

        xs = xm_ref[...]                                    # (rows, stride*cin_p) bf16
        t1 = xs[:, 0:cin_p]                                 # x[j*stride]
        prev_col = xs[:, lane_prev:lane_prev + cin_p]       # x[j*stride + stride - 1]
        xl = xl_ref[HALO - 1:HALO, lane_prev:lane_prev + cin_p].astype(jnp.float32)
        lrow = jnp.where(i > 0, xl, 0.0).astype(cdtype)     # conv zero-padding at L=0
        t0 = _shift_down(prev_col, lrow)                    # x[j*stride - 1]
        if stride == 1:
            xr = xr_ref[0:1, :].astype(jnp.float32)
            rrow = jnp.where(i < nlt - 1, xr, 0.0).astype(cdtype)
            t2 = _shift_up(xs, rrow)                        # x[j + 1]
        else:
            t2 = xs[:, cin_p:2 * cin_p]                     # x[j*stride + 1] (in-tile)

        patches = jnp.concatenate([t0, t1, t2], axis=-1)    # im2col along K
        y = jnp.dot(patches, w_ref[...], preferred_element_type=jnp.float32) + b_ref[...]
        y_ref[...] = y.astype(y_ref.dtype)
        if use_1x1conv:                                     # fused shortcut projection
            res = jnp.dot(t1, w3_ref[...],
                          preferred_element_type=jnp.float32) + b3_ref[...]
            res_ref[...] = res.astype(res_ref.dtype)
        _write_tile_stats(y, st_ref)

    return kernel


def _make_conv2_kernel(tile_axis, cdtype):
    def kernel(ym_ref, yl_ref, yr_ref, sc_ref, sh_ref, w_ref, b_ref, y2_ref, st_ref):
        i = pl.program_id(tile_axis)
        nlt = pl.num_programs(tile_axis)
        scale = sc_ref[...]
        shift = sh_ref[...]

        def bn_relu(v):                    # bn1 affine + ReLU in f32
            return jnp.maximum(v.astype(jnp.float32) * scale + shift, 0.0)

        z = bn_relu(ym_ref[...]).astype(cdtype)
        zl = jnp.where(i > 0, bn_relu(yl_ref[HALO - 1:HALO, :]), 0.0).astype(cdtype)
        zr = jnp.where(i < nlt - 1, bn_relu(yr_ref[0:1, :]), 0.0).astype(cdtype)
        patches = jnp.concatenate([_shift_down(z, zl), z, _shift_up(z, zr)], axis=-1)
        y2 = jnp.dot(patches, w_ref[...], preferred_element_type=jnp.float32) + b_ref[...]
        y2_ref[...] = y2.astype(y2_ref.dtype)
        _write_tile_stats(y2, st_ref)

    return kernel


def _output_kernel(y2_ref, sc_ref, sh_ref, res_ref, o_ref):
    y = y2_ref[...].astype(jnp.float32) * sc_ref[...] + sh_ref[...]
    o_ref[...] = jnp.maximum(y + res_ref[...].astype(jnp.float32), 0.0).astype(o_ref.dtype)


# ------------------------------------------------------------- BN stats finalization
def _bn_scale_shift(stats, gamma, beta, count):
    """Turn per-tile (sum, sum^2) partials into per-channel affine (scale, shift)."""
    n, rows, c = stats.shape
    st = stats.reshape(n, rows // 8, 8, c)
    total = jnp.sum(st[:, :, 0, :], axis=(0, 1))
    total_sq = jnp.sum(st[:, :, 1, :], axis=(0, 1))
    mean = total / count
    var = jnp.maximum(total_sq / count - mean * mean, 0.0)    # biased batch variance
    # TODO(synk): switch to a Welford merge of per-tile (count, mean, M2) partials if
    #             E[x^2]-mean^2 cancellation ever matters for very long sequences.
    scale = gamma * lax.rsqrt(var + EPS)                      # (1, C)
    shift = beta - mean * scale                               # (1, C)
    return scale, shift


# --------------------------------------------------------------------------- wrapper
def residual_forward(x_ncl, params, *, strides=1, use_1x1conv=False, tile_rows=None,
                     compute_dtype=jnp.bfloat16, out_dtype=jnp.bfloat16,
                     channels_last_out=False):
    """x_ncl: (N, C_in, L) f32 (PyTorch NCL).  Returns (N, C_out, L_out) f32 by
    default, or (N, L_out, C_out) in out_dtype when channels_last_out=True."""
    n, cin, l = x_ncl.shape
    cmid = params["w1"].shape[-1]
    if l % strides != 0:
        raise ValueError("L must be divisible by the stride")
    l_out = l // strides
    if not use_1x1conv and (strides != 1 or cin != cmid):
        raise ValueError("identity shortcut requires strides == 1 and cin == cmid")
    if l_out % HALO != 0:
        raise ValueError(f"output length {l_out} must be a multiple of {HALO}")

    cdt = compute_dtype
    f32 = jnp.float32
    cin_p = _round_up(cin, LANES)
    cmid_p = _round_up(cmid, LANES)
    vmem_limit = _vmem_limit_bytes()
    if tile_rows is None:
        tile_rows = _default_tile_rows(l_out, cin_p, cmid_p, strides, vmem_limit)
    if l_out % tile_rows != 0 or tile_rows % HALO != 0:
        raise ValueError("tile_rows must be a multiple of 16 that divides l_out")
    nt = l_out // tile_rows

    # NCL -> NLC (channels lane-dense), zero-pad channels, bf16 matmul operands.
    x_p = _pad_last(jnp.transpose(x_ncl, (0, 2, 1)), cin_p).astype(cdt)
    # Fold the stride into the lane axis (free reshape: identical HBM layout) so the
    # kernels only take aligned lane slices, never strided sublane slices.
    x_s = x_p.reshape(n, l_out, strides * cin_p)

    w1p = _pad_io(params["w1"], cin_p, cmid_p).astype(cdt).reshape(3 * cin_p, cmid_p)
    w2p = _pad_io(params["w2"], cmid_p, cmid_p).astype(cdt).reshape(3 * cmid_p, cmid_p)
    b1p = _pad_last(params["b1"], cmid_p).astype(f32)
    b2p = _pad_last(params["b2"], cmid_p).astype(f32)
    g1p = _pad_last(params["g1"], cmid_p).astype(f32)
    be1p = _pad_last(params["be1"], cmid_p).astype(f32)
    g2p = _pad_last(params["g2"], cmid_p).astype(f32)
    be2p = _pad_last(params["be2"], cmid_p).astype(f32)

    cparams = pltpu.CompilerParams(
        dimension_semantics=("parallel", "parallel"),
        vmem_limit_bytes=vmem_limit,
    )

    # v7x megacore: put the longer parallel extent first so both TensorCores stay busy.
    swap = nt > n
    grid = (nt, n) if swap else (n, nt)
    tile_axis = 0 if swap else 1

    def _bi(g0, g1):                       # -> (batch index, L-tile index)
        return (g1, g0) if swap else (g0, g1)

    def tile_spec(rows, c):
        return pl.BlockSpec((None, rows, c), lambda g0, g1: (*_bi(g0, g1), 0))

    def const_spec(a):
        nd = a.ndim
        return pl.BlockSpec(a.shape, lambda g0, g1: (0,) * nd)

    def halo_specs(c):
        bpt = tile_rows // HALO
        nb = l_out // HALO

        def left_map(g0, g1):
            b, i = _bi(g0, g1)
            return (b, jnp.maximum(i * bpt - 1, 0), 0)

        def right_map(g0, g1):
            b, i = _bi(g0, g1)
            return (b, jnp.minimum((i + 1) * bpt, nb - 1), 0)

        return (pl.BlockSpec((None, HALO, c), left_map),
                pl.BlockSpec((None, HALO, c), right_map))

    stats_spec = tile_spec(8, cmid_p)
    stats_shape = jax.ShapeDtypeStruct((n, nt * 8, cmid_p), f32)
    act_shape = jax.ShapeDtypeStruct((n, l_out, cmid_p), cdt)

    # ---- pass 1: conv1 (+bias), fused 1x1 shortcut, per-tile stats for bn1 ----------
    xl_spec, xr_spec = halo_specs(strides * cin_p)
    in_specs = [tile_spec(tile_rows, strides * cin_p), xl_spec, xr_spec,
                const_spec(w1p), const_spec(b1p)]
    args = [x_s, x_s, x_s, w1p, b1p]
    out_specs = [tile_spec(tile_rows, cmid_p)]
    out_shapes = [act_shape]
    if use_1x1conv:
        w3p = _pad_io(params["w3"], cin_p, cmid_p).astype(cdt)
        b3p = _pad_last(params["b3"], cmid_p).astype(f32)
        in_specs += [const_spec(w3p), const_spec(b3p)]
        args += [w3p, b3p]
        out_specs.append(tile_spec(tile_rows, cmid_p))
        out_shapes.append(act_shape)
    out_specs.append(stats_spec)
    out_shapes.append(stats_shape)

    pass1 = pl.pallas_call(
        _make_conv1_kernel(strides, cin_p, tile_axis, use_1x1conv, cdt),
        grid=grid, in_specs=in_specs, out_specs=tuple(out_specs),
        out_shape=tuple(out_shapes), compiler_params=cparams,
    )(*args)
    if use_1x1conv:
        y1, residual, st1 = pass1
    else:
        y1, st1 = pass1
        residual = x_p                     # identity shortcut (cin == cmid, stride 1)
    scale1, shift1 = _bn_scale_shift(st1, g1p, be1p, n * l_out)

    # ---- pass 2: bn1 + relu + conv2 (+bias), per-tile stats for bn2 ------------------
    yl_spec, yr_spec = halo_specs(cmid_p)
    y2, st2 = pl.pallas_call(
        _make_conv2_kernel(tile_axis, cdt),
        grid=grid,
        in_specs=[tile_spec(tile_rows, cmid_p), yl_spec, yr_spec,
                  const_spec(scale1), const_spec(shift1),
                  const_spec(w2p), const_spec(b2p)],
        out_specs=(tile_spec(tile_rows, cmid_p), stats_spec),
        out_shape=(act_shape, stats_shape),
        compiler_params=cparams,
    )(y1, y1, y1, scale1, shift1, w2p, b2p)
    scale2, shift2 = _bn_scale_shift(st2, g2p, be2p, n * l_out)

    # ---- pass 3: bn2 + shortcut add + relu (pure streaming VPU pass, bf16 output) ----
    out_p = pl.pallas_call(
        _output_kernel,
        grid=grid,
        in_specs=[tile_spec(tile_rows, cmid_p),
                  const_spec(scale2), const_spec(shift2),
                  tile_spec(tile_rows, cmid_p)],
        out_specs=tile_spec(tile_rows, cmid_p),
        out_shape=jax.ShapeDtypeStruct((n, l_out, cmid_p), out_dtype),
        compiler_params=cparams,
    )(y2, scale2, shift2, residual)

    out_nlc = out_p[:, :, :cmid]
    if channels_last_out:
        return out_nlc                     # keep NLC / out_dtype end-to-end
    # TODO(synk): keep activations NLC in the surrounding model to drop this transpose.
    return jnp.transpose(out_nlc, (0, 2, 1)).astype(f32)


# -------------------------------------------------- parameter init (deterministic)
def init_params(key, input_channels, num_channels, use_1x1conv):
    """Conv weights stored kernel-first / channels-last: (K, Cin, Cout)."""
    ks = jax.random.split(key, 6)

    def u(k, shape, fan_in):
        bound = 1.0 / jnp.sqrt(fan_in)
        return jax.random.uniform(k, shape, jnp.float32, -bound, bound)

    p = {
        "w1": u(ks[0], (3, input_channels, num_channels), input_channels * 3),
        "b1": u(ks[1], (1, num_channels), input_channels * 3),
        "w2": u(ks[2], (3, num_channels, num_channels), num_channels * 3),
        "b2": u(ks[3], (1, num_channels), num_channels * 3),
        "g1": jnp.ones((1, num_channels), jnp.float32),
        "be1": jnp.zeros((1, num_channels), jnp.float32),
        "g2": jnp.ones((1, num_channels), jnp.float32),
        "be2": jnp.zeros((1, num_channels), jnp.float32),
    }
    if use_1x1conv:
        p["w3"] = u(ks[4], (input_channels, num_channels), input_channels)
        p["b3"] = u(ks[5], (1, num_channels), input_channels)
    return p


# -------------------------------------------- pure-JAX reference (NCL, like PyTorch)
def reference_forward(x, params, *, strides=1, use_1x1conv=False):
    def conv(x, w_kio, b, s, pad):
        w_oik = jnp.transpose(w_kio, (2, 1, 0))
        y = lax.conv_general_dilated(
            x, w_oik, (s,), [(pad, pad)], dimension_numbers=("NCH", "OIH", "NCH"))
        return y + b.reshape(1, -1, 1)

    def bn(y, g, be):
        m = jnp.mean(y, axis=(0, 2), keepdims=True)
        v = jnp.mean(jnp.square(y - m), axis=(0, 2), keepdims=True)
        return (y - m) / jnp.sqrt(v + EPS) * g.reshape(1, -1, 1) + be.reshape(1, -1, 1)

    y = jax.nn.relu(bn(conv(x, params["w1"], params["b1"], strides, 1),
                       params["g1"], params["be1"]))
    y = bn(conv(y, params["w2"], params["b2"], 1, 1), params["g2"], params["be2"])
    if use_1x1conv:
        w3 = params["w3"].T[:, :, None]
        xr = lax.conv_general_dilated(
            x, w3, (strides,), [(0, 0)], dimension_numbers=("NCH", "OIH", "NCH"))
        xr = xr + params["b3"].reshape(1, -1, 1)
    else:
        xr = x
    return jax.nn.relu(y + xr)


def _as_bf16(a):
    return a.astype(jnp.bfloat16).astype(jnp.float32)


def _bf16_matmul_params(p):
    q = dict(p)
    for k in ("w1", "w2", "w3"):
        if k in q:
            q[k] = _as_bf16(q[k])
    return q


# ------------------------------------------------------------------------------ main
if __name__ == "__main__":
    key = jax.random.PRNGKey(0)
    kx1, kp1, kx2, kp2, kx3, kp3 = jax.random.split(key, 6)

    # Config A: projection (1x1-conv) shortcut, Cin != Cout, two L-tiles (halo path).
    N, L, CIN, CMID = 2, 32, 4, 8
    x_a = jax.random.normal(kx1, (N, CIN, L), jnp.float32)
    p_a = init_params(kp1, CIN, CMID, use_1x1conv=True)
    fwd_a = jax.jit(functools.partial(residual_forward, strides=1, use_1x1conv=True,
                                      tile_rows=16))
    out_a = jax.block_until_ready(fwd_a(x_a, p_a))
    ref_a = reference_forward(_as_bf16(x_a), _bf16_matmul_params(p_a),
                              strides=1, use_1x1conv=True)
    assert out_a.shape == ref_a.shape == (N, CMID, L), (out_a.shape, ref_a.shape)
    err_a = float(jnp.max(jnp.abs(out_a - ref_a)))
    assert jnp.allclose(out_a, ref_a, rtol=4e-2, atol=4e-2), err_a

    # Config B: identity shortcut (Cin == Cout), default (largest) tile, single tile.
    CINB = CMIDB = 8
    x_b = jax.random.normal(kx2, (N, CINB, L), jnp.float32)
    p_b = init_params(kp2, CINB, CMIDB, use_1x1conv=False)
    fwd_b = jax.jit(functools.partial(residual_forward, strides=1, use_1x1conv=False))
    out_b = jax.block_until_ready(fwd_b(x_b, p_b))
    ref_b = reference_forward(_as_bf16(x_b), _bf16_matmul_params(p_b),
                              strides=1, use_1x1conv=False)
    assert out_b.shape == ref_b.shape == (N, CMIDB, L), (out_b.shape, ref_b.shape)
    err_b = float(jnp.max(jnp.abs(out_b - ref_b)))
    assert jnp.allclose(out_b, ref_b, rtol=4e-2, atol=4e-2), err_b

    # Config C: stride-2 projection shortcut (stride folded into lanes, grid swap).
    N3, L3, CIN3, CMID3 = 1, 64, 4, 8
    x_c = jax.random.normal(kx3, (N3, CIN3, L3), jnp.float32)
    p_c = init_params(kp3, CIN3, CMID3, use_1x1conv=True)
    fwd_c = jax.jit(functools.partial(residual_forward, strides=2, use_1x1conv=True,
                                      tile_rows=16))
    out_c = jax.block_until_ready(fwd_c(x_c, p_c))
    ref_c = reference_forward(_as_bf16(x_c), _bf16_matmul_params(p_c),
                              strides=2, use_1x1conv=True)
    assert out_c.shape == ref_c.shape == (N3, CMID3, L3 // 2), (out_c.shape, ref_c.shape)
    err_c = float(jnp.max(jnp.abs(out_c - ref_c)))
    assert jnp.allclose(out_c, ref_c, rtol=4e-2, atol=4e-2), err_c

    print("KERNEL_OK")
</pallas_src>

<mosaic_0001>
module attributes {stable_mosaic.version = 11 : i64} {
  func.func @kernel(%arg0: i32, %arg1: i32, %arg2: memref<1x16x128xbf16, #tpu.memory_space<vmem>>, %arg3: memref<1x16x128xbf16, #tpu.memory_space<vmem>>, %arg4: memref<1x16x128xbf16, #tpu.memory_space<vmem>>, %arg5: memref<384x128xbf16, #tpu.memory_space<vmem>>, %arg6: memref<1x128xf32, #tpu.memory_space<vmem>>, %arg7: memref<128x128xbf16, #tpu.memory_space<vmem>>, %arg8: memref<1x128xf32, #tpu.memory_space<vmem>>, %arg9: memref<1x16x128xbf16, #tpu.memory_space<vmem>>, %arg10: memref<1x16x128xbf16, #tpu.memory_space<vmem>>, %arg11: memref<1x8x128xf32, #tpu.memory_space<vmem>>) attributes {dimension_semantics = [#tpu.dimension_semantics<parallel>, #tpu.dimension_semantics<parallel>], iteration_bounds = array<i64: 2, 2>, scalar_prefetch = 0 : i64, scratch_operands = 0 : i64, tpu.core_type = #tpu.core_type<tc>, window_params = [{transform_indices = @transform_0, window_bounds = array<i64: 1, 16, 128>}, {transform_indices = @transform_1, window_bounds = array<i64: 1, 16, 128>}, {transform_indices = @transform_2, window_bounds = array<i64: 1, 16, 128>}, {pipeline_mode = #tpu.pipeline_mode<synchronous>, transform_indices = @transform_3, window_bounds = array<i64: 384, 128>}, {pipeline_mode = #tpu.pipeline_mode<synchronous>, transform_indices = @transform_4, window_bounds = array<i64: 1, 128>}, {pipeline_mode = #tpu.pipeline_mode<synchronous>, transform_indices = @transform_5, window_bounds = array<i64: 128, 128>}, {pipeline_mode = #tpu.pipeline_mode<synchronous>, transform_indices = @transform_6, window_bounds = array<i64: 1, 128>}, {transform_indices = @transform_7, window_bounds = array<i64: 1, 16, 128>}, {transform_indices = @transform_8, window_bounds = array<i64: 1, 16, 128>}, {transform_indices = @transform_9, window_bounds = array<i64: 1, 8, 128>}]} {
    %c0 = arith.constant 0 : index
    %c0_0 = arith.constant 0 : index
    %c0_1 = arith.constant 0 : index
    %0 = vector.load %arg2[%c0, %c0_0, %c0_1] : memref<1x16x128xbf16, #tpu.memory_space<vmem>>, vector<1x16x128xbf16>
    %1 = vector.shape_cast %0 : vector<1x16x128xbf16> to vector<16x128xbf16>
    %c0_2 = arith.constant 0 : index
    %c15 = arith.constant 15 : index
    %c0_3 = arith.constant 0 : index
    %2 = vector.load %arg3[%c0_2, %c15, %c0_3] : memref<1x16x128xbf16, #tpu.memory_space<vmem>>, vector<1x1x128xbf16>
    %3 = vector.shape_cast %2 : vector<1x1x128xbf16> to vector<1x128xbf16>
    %4 = arith.extf %3 : vector<1x128xbf16> to vector<1x128xf32>
    %c0_i32 = arith.constant 0 : i32
    %5 = arith.cmpi sgt, %arg1, %c0_i32 : i32
    %cst = arith.constant 0.000000e+00 : f32
    %6 = vector.broadcast %cst : f32 to vector<1x128xf32>
    %7 = arith.select %5, %4, %6 : vector<1x128xf32>
    %8 = arith.truncf %7 : vector<1x128xf32> to vector<1x128xbf16>
    %9 = vector.extract_strided_slice %1 {offsets = [0, 0], sizes = [15, 128], strides = [1, 1]} : vector<16x128xbf16> to vector<15x128xbf16>
    %10 = tpu.concatenate %8, %9 in 0 : vector<1x128xbf16>, vector<15x128xbf16> -> vector<16x128xbf16>
    %c0_4 = arith.constant 0 : index
    %c0_5 = arith.constant 0 : index
    %c0_6 = arith.constant 0 : index
    %11 = vector.load %arg4[%c0_4, %c0_5, %c0_6] : memref<1x16x128xbf16, #tpu.memory_space<vmem>>, vector<1x1x128xbf16>
    %12 = vector.shape_cast %11 : vector<1x1x128xbf16> to vector<1x128xbf16>
    %13 = arith.extf %12 : vector<1x128xbf16> to vector<1x128xf32>
    %c1_i32 = arith.constant 1 : i32
    %14 = arith.cmpi slt, %arg1, %c1_i32 : i32
    %cst_7 = arith.constant 0.000000e+00 : f32
    %15 = vector.broadcast %cst_7 : f32 to vector<1x128xf32>
    %16 = arith.select %14, %13, %15 : vector<1x128xf32>
    %17 = arith.truncf %16 : vector<1x128xf32> to vector<1x128xbf16>
    %18 = vector.extract_strided_slice %1 {offsets = [1, 0], sizes = [15, 128], strides = [1, 1]} : vector<16x128xbf16> to vector<15x128xbf16>
    %19 = tpu.concatenate %18, %17 in 0 : vector<15x128xbf16>, vector<1x128xbf16> -> vector<16x128xbf16>
    %20 = tpu.concatenate %10, %1, %19 in 1 : vector<16x128xbf16>, vector<16x128xbf16>, vector<16x128xbf16> -> vector<16x384xbf16>
    %c0_8 = arith.constant 0 : index
    %c0_9 = arith.constant 0 : index
    %21 = vector.load %arg5[%c0_8, %c0_9] : memref<384x128xbf16, #tpu.memory_space<vmem>>, vector<384x128xbf16>
    %cst_10 = arith.constant dense<0.000000e+00> : vector<16x128xf32>
    %22 = tpu.matmul %20, %21, %cst_10 {dimension_numbers = #tpu.dot_dimension_numbers<[1], [0], [0], [1], [0, 0, 1, 1], [], []>} : vector<16x384xbf16>, vector<384x128xbf16>, vector<16x128xf32> -> vector<16x128xf32>
    %c0_11 = arith.constant 0 : index
    %c0_12 = arith.constant 0 : index
    %23 = vector.load %arg6[%c0_11, %c0_12] : memref<1x128xf32, #tpu.memory_space<vmem>>, vector<1x128xf32>
    %24 = vector.broadcast %23 : vector<1x128xf32> to vector<16x128xf32>
    %25 = arith.addf %22, %24 : vector<16x128xf32>
    %26 = arith.truncf %25 : vector<16x128xf32> to vector<16x128xbf16>
    %c0_13 = arith.constant 0 : index
    %c0_14 = arith.constant 0 : index
    %c0_15 = arith.constant 0 : index
    %27 = vector.load %arg9[%c0_13, %c0_14, %c0_15] : memref<1x16x128xbf16, #tpu.memory_space<vmem>>, vector<1x16x128xbf16>
    %28 = vector.shape_cast %27 : vector<1x16x128xbf16> to vector<16x128xbf16>
    %29 = vector.shape_cast %26 : vector<16x128xbf16> to vector<1x16x128xbf16>
    tpu.vector_store %arg9[%c0_13, %c0_14, %c0_15], %29 {strides = array<i32>} : memref<1x16x128xbf16, #tpu.memory_space<vmem>>, vector<1x16x128xbf16>,
    %c0_16 = arith.constant 0 : index
    %c0_17 = arith.constant 0 : index
    %30 = vector.load %arg7[%c0_16, %c0_17] : memref<128x128xbf16, #tpu.memory_space<vmem>>, vector<128x128xbf16>
    %cst_18 = arith.constant dense<0.000000e+00> : vector<16x128xf32>
    %31 = tpu.matmul %1, %30, %cst_18 {dimension_numbers = #tpu.dot_dimension_numbers<[1], [0], [0], [1], [0, 0, 1, 1], [], []>} : vector<16x128xbf16>, vector<128x128xbf16>, vector<16x128xf32> -> vector<16x128xf32>
    %c0_19 = arith.constant 0 : index
    %c0_20 = arith.constant 0 : index
    %32 = vector.load %arg8[%c0_19, %c0_20] : memref<1x128xf32, #tpu.memory_space<vmem>>, vector<1x128xf32>
    %33 = vector.broadcast %32 : vector<1x128xf32> to vector<16x128xf32>
    %34 = arith.addf %31, %33 : vector<16x128xf32>
    %35 = arith.truncf %34 : vector<16x128xf32> to vector<16x128xbf16>
    %c0_21 = arith.constant 0 : index
    %c0_22 = arith.constant 0 : index
    %c0_23 = arith.constant 0 : index
    %36 = vector.load %arg10[%c0_21, %c0_22, %c0_23] : memref<1x16x128xbf16, #tpu.memory_space<vmem>>, vector<1x16x128xbf16>
    %37 = vector.shape_cast %36 : vector<1x16x128xbf16> to vector<16x128xbf16>
    %38 = vector.shape_cast %35 : vector<16x128xbf16> to vector<1x16x128xbf16>
    tpu.vector_store %arg10[%c0_21, %c0_22, %c0_23], %38 {strides = array<i32>} : memref<1x16x128xbf16, #tpu.memory_space<vmem>>, vector<1x16x128xbf16>,
    %cst_24 = arith.constant dense<0.000000e+00> : vector<128xf32>
    %39 = vector.multi_reduction <add>, %25, %cst_24 [0] : vector<16x128xf32> to vector<128xf32>
    %40 = vector.shape_cast %39 : vector<128xf32> to vector<1x128xf32>
    %41 = arith.mulf %25, %25 : vector<16x128xf32>
    %cst_25 = arith.constant dense<0.000000e+00> : vector<128xf32>
    %42 = vector.multi_reduction <add>, %41, %cst_25 [0] : vector<16x128xf32> to vector<128xf32>
    %43 = vector.shape_cast %42 : vector<128xf32> to vector<1x128xf32>
    %cst_26 = arith.constant 0.000000e+00 : f32
    %44 = vector.broadcast %cst_26 : f32 to vector<6x128xf32>
    %45 = tpu.concatenate %40, %43, %44 in 0 : vector<1x128xf32>, vector<1x128xf32>, vector<6x128xf32> -> vector<8x128xf32>
    %c0_27 = arith.constant 0 : index
    %c0_28 = arith.constant 0 : index
    %c0_29 = arith.constant 0 : index
    %46 = vector.load %arg11[%c0_27, %c0_28, %c0_29] : memref<1x8x128xf32, #tpu.memory_space<vmem>>, vector<1x8x128xf32>
    %47 = vector.shape_cast %46 : vector<1x8x128xf32> to vector<8x128xf32>
    %48 = vector.shape_cast %45 : vector<8x128xf32> to vector<1x8x128xf32>
    tpu.vector_store %arg11[%c0_27, %c0_28, %c0_29], %48 {strides = array<i32>} : memref<1x8x128xf32, #tpu.memory_space<vmem>>, vector<1x8x128xf32>,
    return
  }
  func.func @transform_0(%arg0: i32, %arg1: i32) -> (i32, i32, i32) {
    %c0_i32 = arith.constant 0 : i32
    %c0_i32_0 = arith.constant 0 : i32
    return %arg0, %arg1, %c0_i32 : i32, i32, i32
  }
  func.func @transform_1(%arg0: i32, %arg1: i32) -> (i32, i32, i32) {
    %c1_i32 = arith.constant 1 : i32
    %0 = arith.muli %arg1, %c1_i32 : i32
    %c1_i32_0 = arith.constant 1 : i32
    %1 = arith.subi %0, %c1_i32_0 : i32
    %c0_i32 = arith.constant 0 : i32
    %2 = arith.maxsi %1, %c0_i32 : i32
    %c0_i32_1 = arith.constant 0 : i32
    %c0_i32_2 = arith.constant 0 : i32
    return %arg0, %2, %c0_i32_1 : i32, i32, i32
  }
  func.func @transform_2(%arg0: i32, %arg1: i32) -> (i32, i32, i32) {
    %c1_i32 = arith.constant 1 : i32
    %0 = arith.addi %arg1, %c1_i32 : i32
    %c1_i32_0 = arith.constant 1 : i32
    %1 = arith.muli %0, %c1_i32_0 : i32
    %c1_i32_1 = arith.constant 1 : i32
    %2 = arith.minsi %1, %c1_i32_1 : i32
    %c0_i32 = arith.constant 0 : i32
    %c0_i32_2 = arith.constant 0 : i32
    return %arg0, %2, %c0_i32 : i32, i32, i32
  }
  func.func @transform_3(%arg0: i32, %arg1: i32) -> (i32, i32) {
    %c0_i32 = arith.constant 0 : i32
    %c0_i32_0 = arith.constant 0 : i32
    %c0_i32_1 = arith.constant 0 : i32
    return %c0_i32, %c0_i32_0 : i32, i32
  }
  func.func @transform_4(%arg0: i32, %arg1: i32) -> (i32, i32) {
    %c0_i32 = arith.constant 0 : i32
    %c0_i32_0 = arith.constant 0 : i32
    %c0_i32_1 = arith.constant 0 : i32
    return %c0_i32, %c0_i32_0 : i32, i32
  }
  func.func @transform_5(%arg0: i32, %arg1: i32) -> (i32, i32) {
    %c0_i32 = arith.constant 0 : i32
    %c0_i32_0 = arith.constant 0 : i32
    %c0_i32_1 = arith.constant 0 : i32
    return %c0_i32, %c0_i32_0 : i32, i32
  }
  func.func @transform_6(%arg0: i32, %arg1: i32) -> (i32, i32) {
    %c0_i32 = arith.constant 0 : i32
    %c0_i32_0 = arith.constant 0 : i32
    %c0_i32_1 = arith.constant 0 : i32
    return %c0_i32, %c0_i32_0 : i32, i32
  }
  func.func @transform_7(%arg0: i32, %arg1: i32) -> (i32, i32, i32) {
    %c0_i32 = arith.constant 0 : i32
    %c0_i32_0 = arith.constant 0 : i32
    return %arg0, %arg1, %c0_i32 : i32, i32, i32
  }
  func.func @transform_8(%arg0: i32, %arg1: i32) -> (i32, i32, i32) {
    %c0_i32 = arith.constant 0 : i32
    %c0_i32_0 = arith.constant 0 : i32
    return %arg0, %arg1, %c0_i32 : i32, i32, i32
  }
  func.func @transform_9(%arg0: i32, %arg1: i32) -> (i32, i32, i32) {
    %c0_i32 = arith.constant 0 : i32
    %c0_i32_0 = arith.constant 0 : i32
    return %arg0, %arg1, %c0_i32 : i32, i32, i32
  }
}

module attributes {stable_mosaic.version = 11 : i64} {
  func.func @kernel(%arg0: i32, %arg1: i32, %arg2: memref<1x16x128xbf16, #tpu.memory_space<vmem>>, %arg3: memref<1x16x128xbf16, #tpu.memory_space<vmem>>, %arg4: memref<1x16x128xbf16, #tpu.memory_space<vmem>>, %arg5: memref<1x128xf32, #tpu.memory_space<vmem>>, %arg6: memref<1x128xf32, #tpu.memory_space<vmem>>, %arg7: memref<384x128xbf16, #tpu.memory_space<vmem>>, %arg8: memref<1x128xf32, #tpu.memory_space<vmem>>, %arg9: memref<1x16x128xbf16, #tpu.memory_space<vmem>>, %arg10: memref<1x8x128xf32, #tpu.memory_space<vmem>>) attributes {dimension_semantics = [#tpu.dimension_semantics<parallel>, #tpu.dimension_semantics<parallel>], iteration_bounds = array<i64: 2, 2>, scalar_prefetch = 0 : i64, scratch_operands = 0 : i64, tpu.core_type = #tpu.core_type<tc>, window_params = [{transform_indices = @transform_0, window_bounds = array<i64: 1, 16, 128>}, {transform_indices = @transform_1, window_bounds = array<i64: 1, 16, 128>}, {transform_indices = @transform_2, window_bounds = array<i64: 1, 16, 128>}, {pipeline_mode = #tpu.pipeline_mode<synchronous>, transform_indices = @transform_3, window_bounds = array<i64: 1, 128>}, {pipeline_mode = #tpu.pipeline_mode<synchronous>, transform_indices = @transform_4, window_bounds = array<i64: 1, 128>}, {pipeline_mode = #tpu.pipeline_mode<synchronous>, transform_indices = @transform_5, window_bounds = array<i64: 384, 128>}, {pipeline_mode = #tpu.pipeline_mode<synchronous>, transform_indices = @transform_6, window_bounds = array<i64: 1, 128>}, {transform_indices = @transform_7, window_bounds = array<i64: 1, 16, 128>}, {transform_indices = @transform_8, window_bounds = array<i64: 1, 8, 128>}]} {
    %c0 = arith.constant 0 : index
    %c0_0 = arith.constant 0 : index
    %0 = vector.load %arg5[%c0, %c0_0] : memref<1x128xf32, #tpu.memory_space<vmem>>, vector<1x128xf32>
    %c0_1 = arith.constant 0 : index
    %c0_2 = arith.constant 0 : index
    %1 = vector.load %arg6[%c0_1, %c0_2] : memref<1x128xf32, #tpu.memory_space<vmem>>, vector<1x128xf32>
    %c0_3 = arith.constant 0 : index
    %c0_4 = arith.constant 0 : index
    %c0_5 = arith.constant 0 : index
    %2 = vector.load %arg2[%c0_3, %c0_4, %c0_5] : memref<1x16x128xbf16, #tpu.memory_space<vmem>>, vector<1x16x128xbf16>
    %3 = vector.shape_cast %2 : vector<1x16x128xbf16> to vector<16x128xbf16>
    %4 = arith.extf %3 : vector<16x128xbf16> to vector<16x128xf32>
    %5 = vector.broadcast %0 : vector<1x128xf32> to vector<16x128xf32>
    %6 = arith.mulf %4, %5 : vector<16x128xf32>
    %7 = vector.broadcast %1 : vector<1x128xf32> to vector<16x128xf32>
    %8 = arith.addf %6, %7 : vector<16x128xf32>
    %cst = arith.constant 0.000000e+00 : f32
    %9 = vector.broadcast %cst : f32 to vector<16x128xf32>
    %10 = arith.maximumf %8, %9 : vector<16x128xf32>
    %11 = arith.truncf %10 : vector<16x128xf32> to vector<16x128xbf16>
    %c0_i32 = arith.constant 0 : i32
    %12 = arith.cmpi sgt, %arg1, %c0_i32 : i32
    %c0_6 = arith.constant 0 : index
    %c15 = arith.constant 15 : index
    %c0_7 = arith.constant 0 : index
    %13 = vector.load %arg3[%c0_6, %c15, %c0_7] : memref<1x16x128xbf16, #tpu.memory_space<vmem>>, vector<1x1x128xbf16>
    %14 = vector.shape_cast %13 : vector<1x1x128xbf16> to vector<1x128xbf16>
    %15 = arith.extf %14 : vector<1x128xbf16> to vector<1x128xf32>
    %16 = arith.mulf %15, %0 : vector<1x128xf32>
    %17 = arith.addf %16, %1 : vector<1x128xf32>
    %cst_8 = arith.constant 0.000000e+00 : f32
    %18 = vector.broadcast %cst_8 : f32 to vector<1x128xf32>
    %19 = arith.maximumf %17, %18 : vector<1x128xf32>
    %cst_9 = arith.constant 0.000000e+00 : f32
    %20 = vector.broadcast %cst_9 : f32 to vector<1x128xf32>
    %21 = arith.select %12, %19, %20 : vector<1x128xf32>
    %22 = arith.truncf %21 : vector<1x128xf32> to vector<1x128xbf16>
    %c1_i32 = arith.constant 1 : i32
    %23 = arith.cmpi slt, %arg1, %c1_i32 : i32
    %c0_10 = arith.constant 0 : index
    %c0_11 = arith.constant 0 : index
    %c0_12 = arith.constant 0 : index
    %24 = vector.load %arg4[%c0_10, %c0_11, %c0_12] : memref<1x16x128xbf16, #tpu.memory_space<vmem>>, vector<1x1x128xbf16>
    %25 = vector.shape_cast %24 : vector<1x1x128xbf16> to vector<1x128xbf16>
    %26 = arith.extf %25 : vector<1x128xbf16> to vector<1x128xf32>
    %27 = arith.mulf %26, %0 : vector<1x128xf32>
    %28 = arith.addf %27, %1 : vector<1x128xf32>
    %cst_13 = arith.constant 0.000000e+00 : f32
    %29 = vector.broadcast %cst_13 : f32 to vector<1x128xf32>
    %30 = arith.maximumf %28, %29 : vector<1x128xf32>
    %cst_14 = arith.constant 0.000000e+00 : f32
    %31 = vector.broadcast %cst_14 : f32 to vector<1x128xf32>
    %32 = arith.select %23, %30, %31 : vector<1x128xf32>
    %33 = arith.truncf %32 : vector<1x128xf32> to vector<1x128xbf16>
    %34 = vector.extract_strided_slice %11 {offsets = [0, 0], sizes = [15, 128], strides = [1, 1]} : vector<16x128xbf16> to vector<15x128xbf16>
    %35 = tpu.concatenate %22, %34 in 0 : vector<1x128xbf16>, vector<15x128xbf16> -> vector<16x128xbf16>
    %36 = vector.extract_strided_slice %11 {offsets = [1, 0], sizes = [15, 128], strides = [1, 1]} : vector<16x128xbf16> to vector<15x128xbf16>
    %37 = tpu.concatenate %36, %33 in 0 : vector<15x128xbf16>, vector<1x128xbf16> -> vector<16x128xbf16>
    %38 = tpu.concatenate %35, %11, %37 in 1 : vector<16x128xbf16>, vector<16x128xbf16>, vector<16x128xbf16> -> vector<16x384xbf16>
    %c0_15 = arith.constant 0 : index
    %c0_16 = arith.constant 0 : index
    %39 = vector.load %arg7[%c0_15, %c0_16] : memref<384x128xbf16, #tpu.memory_space<vmem>>, vector<384x128xbf16>
    %cst_17 = arith.constant dense<0.000000e+00> : vector<16x128xf32>
    %40 = tpu.matmul %38, %39, %cst_17 {dimension_numbers = #tpu.dot_dimension_numbers<[1], [0], [0], [1], [0, 0, 1, 1], [], []>} : vector<16x384xbf16>, vector<384x128xbf16>, vector<16x128xf32> -> vector<16x128xf32>
    %c0_18 = arith.constant 0 : index
    %c0_19 = arith.constant 0 : index
    %41 = vector.load %arg8[%c0_18, %c0_19] : memref<1x128xf32, #tpu.memory_space<vmem>>, vector<1x128xf32>
    %42 = vector.broadcast %41 : vector<1x128xf32> to vector<16x128xf32>
    %43 = arith.addf %40, %42 : vector<16x128xf32>
    %44 = arith.truncf %43 : vector<16x128xf32> to vector<16x128xbf16>
    %c0_20 = arith.constant 0 : index
    %c0_21 = arith.constant 0 : index
    %c0_22 = arith.constant 0 : index
    %45 = vector.load %arg9[%c0_20, %c0_21, %c0_22] : memref<1x16x128xbf16, #tpu.memory_space<vmem>>, vector<1x16x128xbf16>
    %46 = vector.shape_cast %45 : vector<1x16x128xbf16> to vector<16x128xbf16>
    %47 = vector.shape_cast %44 : vector<16x128xbf16> to vector<1x16x128xbf16>
    tpu.vector_store %arg9[%c0_20, %c0_21, %c0_22], %47 {strides = array<i32>} : memref<1x16x128xbf16, #tpu.memory_space<vmem>>, vector<1x16x128xbf16>,
    %cst_23 = arith.constant dense<0.000000e+00> : vector<128xf32>
    %48 = vector.multi_reduction <add>, %43, %cst_23 [0] : vector<16x128xf32> to vector<128xf32>
    %49 = vector.shape_cast %48 : vector<128xf32> to vector<1x128xf32>
    %50 = arith.mulf %43, %43 : vector<16x128xf32>
    %cst_24 = arith.constant dense<0.000000e+00> : vector<128xf32>
    %51 = vector.multi_reduction <add>, %50, %cst_24 [0] : vector<16x128xf32> to vector<128xf32>
    %52 = vector.shape_cast %51 : vector<128xf32> to vector<1x128xf32>
    %cst_25 = arith.constant 0.000000e+00 : f32
    %53 = vector.broadcast %cst_25 : f32 to vector<6x128xf32>
    %54 = tpu.concatenate %49, %52, %53 in 0 : vector<1x128xf32>, vector<1x128xf32>, vector<6x128xf32> -> vector<8x128xf32>
    %c0_26 = arith.constant 0 : index
    %c0_27 = arith.constant 0 : index
    %c0_28 = arith.constant 0 : index
    %55 = vector.load %arg10[%c0_26, %c0_27, %c0_28] : memref<1x8x128xf32, #tpu.memory_space<vmem>>, vector<1x8x128xf32>
    %56 = vector.shape_cast %55 : vector<1x8x128xf32> to vector<8x128xf32>
    %57 = vector.shape_cast %54 : vector<8x128xf32> to vector<1x8x128xf32>
    tpu.vector_store %arg10[%c0_26, %c0_27, %c0_28], %57 {strides = array<i32>} : memref<1x8x128xf32, #tpu.memory_space<vmem>>, vector<1x8x128xf32>,
    return
  }
  func.func @transform_0(%arg0: i32, %arg1: i32) -> (i32, i32, i32) {
    %c0_i32 = arith.constant 0 : i32
    %c0_i32_0 = arith.constant 0 : i32
    return %arg0, %arg1, %c0_i32 : i32, i32, i32
  }
  func.func @transform_1(%arg0: i32, %arg1: i32) -> (i32, i32, i32) {
    %c1_i32 = arith.constant 1 : i32
    %0 = arith.muli %arg1, %c1_i32 : i32
    %c1_i32_0 = arith.constant 1 : i32
    %1 = arith.subi %0, %c1_i32_0 : i32
    %c0_i32 = arith.constant 0 : i32
    %2 = arith.maxsi %1, %c0_i32 : i32
    %c0_i32_1 = arith.constant 0 : i32
    %c0_i32_2 = arith.constant 0 : i32
    return %arg0, %2, %c0_i32_1 : i32, i32, i32
  }
  func.func @transform_2(%arg0: i32, %arg1: i32) -> (i32, i32, i32) {
    %c1_i32 = arith.constant 1 : i32
    %0 = arith.addi %arg1, %c1_i32 : i32
    %c1_i32_0 = arith.constant 1 : i32
    %1 = arith.muli %0, %c1_i32_0 : i32
    %c1_i32_1 = arith.constant 1 : i32
    %2 = arith.minsi %1, %c1_i32_1 : i32
    %c0_i32 = arith.constant 0 : i32
    %c0_i32_2 = arith.constant 0 : i32
    return %arg0, %2, %c0_i32 : i32, i32, i32
  }
  func.func @transform_3(%arg0: i32, %arg1: i32) -> (i32, i32) {
    %c0_i32 = arith.constant 0 : i32
    %c0_i32_0 = arith.constant 0 : i32
    %c0_i32_1 = arith.constant 0 : i32
    return %c0_i32, %c0_i32_0 : i32, i32
  }
  func.func @transform_4(%arg0: i32, %arg1: i32) -> (i32, i32) {
    %c0_i32 = arith.constant 0 : i32
    %c0_i32_0 = arith.constant 0 : i32
    %c0_i32_1 = arith.constant 0 : i32
    return %c0_i32, %c0_i32_0 : i32, i32
  }
  func.func @transform_5(%arg0: i32, %arg1: i32) -> (i32, i32) {
    %c0_i32 = arith.constant 0 : i32
    %c0_i32_0 = arith.constant 0 : i32
    %c0_i32_1 = arith.constant 0 : i32
    return %c0_i32, %c0_i32_0 : i32, i32
  }
  func.func @transform_6(%arg0: i32, %arg1: i32) -> (i32, i32) {
    %c0_i32 = arith.constant 0 : i32
    %c0_i32_0 = arith.constant 0 : i32
    %c0_i32_1 = arith.constant 0 : i32
    return %c0_i32, %c0_i32_0 : i32, i32
  }
  func.func @transform_7(%arg0: i32, %arg1: i32) -> (i32, i32, i32) {
    %c0_i32 = arith.constant 0 : i32
    %c0_i32_0 = arith.constant 0 : i32
    return %arg0, %arg1, %c0_i32 : i32, i32, i32
  }
  func.func @transform_8(%arg0: i32, %arg1: i32) -> (i32, i32, i32) {
    %c0_i32 = arith.constant 0 : i32
    %c0_i32_0 = arith.constant 0 : i32
    return %arg0, %arg1, %c0_i32 : i32, i32, i32
  }
}

module attributes {stable_mosaic.version = 11 : i64} {
  func.func @_output_kernel(%arg0: i32, %arg1: i32, %arg2: memref<1x16x128xbf16, #tpu.memory_space<vmem>>, %arg3: memref<1x128xf32, #tpu.memory_space<vmem>>, %arg4: memref<1x128xf32, #tpu.memory_space<vmem>>, %arg5: memref<1x16x128xbf16, #tpu.memory_space<vmem>>, %arg6: memref<1x16x128xbf16, #tpu.memory_space<vmem>>) attributes {dimension_semantics = [#tpu.dimension_semantics<parallel>, #tpu.dimension_semantics<parallel>], iteration_bounds = array<i64: 2, 2>, scalar_prefetch = 0 : i64, scratch_operands = 0 : i64, tpu.core_type = #tpu.core_type<tc>, window_params = [{transform_indices = @transform_0, window_bounds = array<i64: 1, 16, 128>}, {pipeline_mode = #tpu.pipeline_mode<synchronous>, transform_indices = @transform_1, window_bounds = array<i64: 1, 128>}, {pipeline_mode = #tpu.pipeline_mode<synchronous>, transform_indices = @transform_2, window_bounds = array<i64: 1, 128>}, {transform_indices = @transform_3, window_bounds = array<i64: 1, 16, 128>}, {transform_indices = @transform_4, window_bounds = array<i64: 1, 16, 128>}]} {
    %c0 = arith.constant 0 : index
    %c0_0 = arith.constant 0 : index
    %c0_1 = arith.constant 0 : index
    %0 = vector.load %arg2[%c0, %c0_0, %c0_1] : memref<1x16x128xbf16, #tpu.memory_space<vmem>>, vector<1x16x128xbf16>
    %1 = vector.shape_cast %0 : vector<1x16x128xbf16> to vector<16x128xbf16>
    %2 = arith.extf %1 : vector<16x128xbf16> to vector<16x128xf32>
    %c0_2 = arith.constant 0 : index
    %c0_3 = arith.constant 0 : index
    %3 = vector.load %arg3[%c0_2, %c0_3] : memref<1x128xf32, #tpu.memory_space<vmem>>, vector<1x128xf32>
    %4 = vector.broadcast %3 : vector<1x128xf32> to vector<16x128xf32>
    %5 = arith.mulf %2, %4 : vector<16x128xf32>
    %c0_4 = arith.constant 0 : index
    %c0_5 = arith.constant 0 : index
    %6 = vector.load %arg4[%c0_4, %c0_5] : memref<1x128xf32, #tpu.memory_space<vmem>>, vector<1x128xf32>
    %7 = vector.broadcast %6 : vector<1x128xf32> to vector<16x128xf32>
    %8 = arith.addf %5, %7 : vector<16x128xf32>
    %c0_6 = arith.constant 0 : index
    %c0_7 = arith.constant 0 : index
    %c0_8 = arith.constant 0 : index
    %9 = vector.load %arg5[%c0_6, %c0_7, %c0_8] : memref<1x16x128xbf16, #tpu.memory_space<vmem>>, vector<1x16x128xbf16>
    %10 = vector.shape_cast %9 : vector<1x16x128xbf16> to vector<16x128xbf16>
    %11 = arith.extf %10 : vector<16x128xbf16> to vector<16x128xf32>
    %12 = arith.addf %8, %11 : vector<16x128xf32>
    %cst = arith.constant 0.000000e+00 : f32
    %13 = vector.broadcast %cst : f32 to vector<16x128xf32>
    %14 = arith.maximumf %12, %13 : vector<16x128xf32>
    %15 = arith.truncf %14 : vector<16x128xf32> to vector<16x128xbf16>
    %c0_9 = arith.constant 0 : index
    %c0_10 = arith.constant 0 : index
    %c0_11 = arith.constant 0 : index
    %16 = vector.load %arg6[%c0_9, %c0_10, %c0_11] : memref<1x16x128xbf16, #tpu.memory_space<vmem>>, vector<1x16x128xbf16>
    %17 = vector.shape_cast %16 : vector<1x16x128xbf16> to vector<16x128xbf16>
    %18 = vector.shape_cast %15 : vector<16x128xbf16> to vector<1x16x128xbf16>
    tpu.vector_store %arg6[%c0_9, %c0_10, %c0_11], %18 {strides = array<i32>} : memref<1x16x128xbf16, #tpu.memory_space<vmem>>, vector<1x16x128xbf16>,
    return
  }
  func.func @transform_0(%arg0: i32, %arg1: i32) -> (i32, i32, i32) {
    %c0_i32 = arith.constant 0 : i32
    %c0_i32_0 = arith.constant 0 : i32
    return %arg0, %arg1, %c0_i32 : i32, i32, i32
  }
  func.func @transform_1(%arg0: i32, %arg1: i32) -> (i32, i32) {
    %c0_i32 = arith.constant 0 : i32
    %c0_i32_0 = arith.constant 0 : i32
    %c0_i32_1 = arith.constant 0 : i32
    return %c0_i32, %c0_i32_0 : i32, i32
  }
  func.func @transform_2(%arg0: i32, %arg1: i32) -> (i32, i32) {
    %c0_i32 = arith.constant 0 : i32
    %c0_i32_0 = arith.constant 0 : i32
    %c0_i32_1 = arith.constant 0 : i32
    return %c0_i32, %c0_i32_0 : i32, i32
  }
  func.func @transform_3(%arg0: i32, %arg1: i32) -> (i32, i32, i32) {
    %c0_i32 = arith.constant 0 : i32
    %c0_i32_0 = arith.constant 0 : i32
    return %arg0, %arg1, %c0_i32 : i32, i32, i32
  }
  func.func @transform_4(%arg0: i32, %arg1: i32) -> (i32, i32, i32) {
    %c0_i32 = arith.constant 0 : i32
    %c0_i32_0 = arith.constant 0 : i32
    return %arg0, %arg1, %c0_i32 : i32, i32, i32
  }
}

</mosaic_0001>

<llo_original>
// kernel: residual_forward.5
$region0: #{residual_forward.5}
  #allocation0 [shape = 'u32[]', space=smem, size = 0x4, offset = 0x4, fixed_abs, tag = 'smem constant byte address 0x4 - core index']
  #allocation1 [shape = 'u32[144,128]{1,0:T(1,128)}', space=vmem, size = 0x12000, scoped, tag = 'internal scratch']
  %s0 = inlined_call_operand.hbm [shape: bf16[2,32,128], index: 0, kind: input, shape index: {}]
  %s1 = inlined_call_operand.hbm [shape: f32[1,128], index: 1, kind: input, shape index: {}]
  %s2 = inlined_call_operand.hbm [shape: f32[1,128], index: 2, kind: input, shape index: {}]
  %s3 = inlined_call_operand.hbm [shape: bf16[2,32,128], index: 3, kind: input, shape index: {}]
  %s4 = inlined_call_operand.hbm [shape: bf16[2,32,128], index: 4, kind: output, shape index: {}]
  %s5 = sld [smem:[#allocation0]]
  $region65: #{residual_forward.5} parent=0
    _
  %s7 = ssub.s32 1, %s5
  %s8 = scalar_select 0, %s7, %s5
  $region1: #{residual_forward.5} parent=0
    #allocation2 [shape = 'u8[8192]{0}', space=vmem, size = 0x2000, scoped, tag = 'input window, operand 0']
    #allocation3 [shape = 's32[2]{0}', space=sflag, size = 0x8, scoped, tag = 'scoped memory for residual_forward.5']
    #allocation4 [shape = 's32[2]{0}', space=sflag, size = 0x8, scoped, tag = 'scoped memory for residual_forward.5']
    #allocation5 [shape = 'u8[512]{0}', space=vmem, size = 0x400, scoped, tag = 'input window, operand 1, single buffered']
    #allocation6 [shape = 's32[1]{0}', space=sflag, size = 0x4, scoped, tag = 'scoped memory for residual_forward.5']
    #allocation7 [shape = 'u8[512]{0}', space=vmem, size = 0x400, scoped, tag = 'input window, operand 2, single buffered']
    #allocation8 [shape = 'u8[8192]{0}', space=vmem, size = 0x2000, scoped, tag = 'input window, operand 3']
    #allocation9 [shape = 's32[2]{0}', space=sflag, size = 0x8, scoped, tag = 'scoped memory for residual_forward.5']
    #allocation10 [shape = 'u8[8192]{0}', space=vmem, size = 0x2000, scoped, tag = 'output window, operand 0']
    %9 = vsyncpa [#allocation3], 0
    %s10 = scalar_lea.sflag [#allocation3], 1
    %11 = vsyncpa %s10, 0
    %12 = vsyncpa [#allocation6], 0
    %13 = vsyncpa [#allocation9], 0
    %s14 = scalar_lea.sflag [#allocation9], 1
    %15 = vsyncpa %s14, 0
    %16 = vsyncpa [#allocation4], 0
    %s17 = scalar_lea.sflag [#allocation4], 1
    %18 = vsyncpa %s17, 0
    loop: start=0, step=1, limit=6
    $region2: #{residual_forward.5} parent=1 // loop_pre_header
      _
    $region3: #{residual_forward.5} parent=1 // loop_header
      %s20 = sphi 0, %s24
      %p21 = scmp.ge.s32.totalorder %s20, 6
      %s27 = sphi 0, %s39
      %s28 = sphi 0, %s35
      %s29 = sphi 0, %s27
      %s30 = sphi 0, %s28
      %s31 = sphi 0, %s29
      %s32 = sphi 0, %s30
      %s44 = sphi 0, %s46
      %s47 = sphi 0, %s44
      %s48 = sphi 0, %s47
      %s64 = sphi 0, %s48
      %s68 = sphi 0, %s68
      %s70 = sphi 0, %s68
      %s71 = sphi 0, %s70
      %s85 = sphi 0, %s71
      %s89 = sphi 0, %s89
      %s91 = sphi 0, %s89
      %s92 = sphi 0, %s91
      %s106 = sphi 0, %s92
      %s114 = sphi 0, %s116
      %s117 = sphi 0, %s114
      %s118 = sphi 0, %s117
      %s134 = sphi 0, %s118
      %s142 = sphi 0, %s144
      %s145 = sphi 0, %s142
      %s146 = sphi 0, %s145
      %s162 = sphi 0, %s146
    $region4: #{residual_forward.5} parent=1 // loop_header_branch
      %23 = sbr.rel (%p21) target = $region8
    $region5: #{residual_forward.5} parent=1 // loop_body
      %s25 = ssub.s32 %s20, 1
      %s26 = ssub.s32 %s20, 2
      %s33 = sadd.s32 1, %s28
      %p34 = scmp.ge.s32.totalorder %s33, 2
      %s35 = scalar_select %p34, 0, %s33
      %s36 = sadd.s32 1, %s27
      %s37 = scalar_select %p34, %s36, %s27
      %p38 = scmp.ge.s32.totalorder %s37, 2
      %s39 = scalar_select %p38, 0, %s37
      %s40 = ssub.s32 %s27, %s39
      %s41 = ssub.s32 %s28, %s35
      %s42 = sor.u32 %s40, %s41
      %p43 = scmp.eq.s32.totalorder %s42, 0
      %s45 = sadd.s32 %s44, 1
      %s46 = scalar_select %p43, %s44, %s45
      %p49 = pneg %p43
      %p50 = scmp.eq.s32.totalorder %s20, 3
      %p51 = por %p49, %p50
      %p52 = scmp.ne.s32.totalorder %s44, %s47
      %p53 = scmp.eq.s32.totalorder %s20, 0
      %p54 = por %p52, %p53
      %p55 = scmp.ne.s32.totalorder %s44, %s47
      %p56 = scmp.eq.s32.totalorder %s25, 3
      %p57 = por %p55, %p56
      %p58 = scmp.ne.s32.totalorder %s47, %s48
      %p59 = scmp.eq.s32.totalorder %s25, 0
      %p60 = por %p58, %p59
      %p61 = scmp.ne.s32.totalorder %s47, %s48
      %p62 = scmp.eq.s32.totalorder %s26, 3
      %p63 = por %p61, %p62
      %p65 = scmp.ne.s32.totalorder %s48, %s64
      %p66 = scmp.eq.s32.totalorder %s26, 0
      %p67 = por %p65, %p66
      %s69 = sadd.s32 %s68, 1
      %p72 = scmp.eq.s32.totalorder %s20, 3
      %p73 = scmp.ne.s32.totalorder %s68, %s70
      %p74 = scmp.eq.s32.totalorder %s20, 0
      %p75 = por %p73, %p74
      %p76 = scmp.ne.s32.totalorder %s68, %s70
      %p77 = scmp.eq.s32.totalorder %s25, 3
      %p78 = por %p76, %p77
      %p79 = scmp.ne.s32.totalorder %s70, %s71
      %p80 = scmp.eq.s32.totalorder %s25, 0
      %p81 = por %p79, %p80
      %p82 = scmp.ne.s32.totalorder %s70, %s71
      %p83 = scmp.eq.s32.totalorder %s26, 3
      %p84 = por %p82, %p83
      %p86 = scmp.ne.s32.totalorder %s71, %s85
      %p87 = scmp.eq.s32.totalorder %s26, 0
      %p88 = por %p86, %p87
      %s90 = sadd.s32 %s89, 1
      %p93 = scmp.eq.s32.totalorder %s20, 3
      %p94 = scmp.ne.s32.totalorder %s89, %s91
      %p95 = scmp.eq.s32.totalorder %s20, 0
      %p96 = por %p94, %p95
      %p97 = scmp.ne.s32.totalorder %s89, %s91
      %p98 = scmp.eq.s32.totalorder %s25, 3
      %p99 = por %p97, %p98
      %p100 = scmp.ne.s32.totalorder %s91, %s92
      %p101 = scmp.eq.s32.totalorder %s25, 0
      %p102 = por %p100, %p101
      %p103 = scmp.ne.s32.totalorder %s91, %s92
      %p104 = scmp.eq.s32.totalorder %s26, 3
      %p105 = por %p103, %p104
      %p107 = scmp.ne.s32.totalorder %s92, %s106
      %p108 = scmp.eq.s32.totalorder %s26, 0
      %p109 = por %p107, %p108
      %s110 = ssub.s32 %s27, %s39
      %s111 = ssub.s32 %s28, %s35
      %s112 = sor.u32 %s110, %s111
      %p113 = scmp.eq.s32.totalorder %s112, 0
      %s115 = sadd.s32 %s114, 1
      %s116 = scalar_select %p113, %s114, %s115
      %p119 = pneg %p113
      %p120 = scmp.eq.s32.totalorder %s20, 3
      %p121 = por %p119, %p120
      %p122 = scmp.ne.s32.totalorder %s114, %s117
      %p123 = scmp.eq.s32.totalorder %s20, 0
      %p124 = por %p122, %p123
      %p125 = scmp.ne.s32.totalorder %s114, %s117
      %p126 = scmp.eq.s32.totalorder %s25, 3
      %p127 = por %p125, %p126
      %p128 = scmp.ne.s32.totalorder %s117, %s118
      %p129 = scmp.eq.s32.totalorder %s25, 0
      %p130 = por %p128, %p129
      %p131 = scmp.ne.s32.totalorder %s117, %s118
      %p132 = scmp.eq.s32.totalorder %s26, 3
      %p133 = por %p131, %p132
      %p135 = scmp.ne.s32.totalorder %s118, %s134
      %p136 = scmp.eq.s32.totalorder %s26, 0
      %p137 = por %p135, %p136
      %s138 = ssub.s32 %s27, %s39
      %s139 = ssub.s32 %s28, %s35
      %s140 = sor.u32 %s138, %s139
      %p141 = scmp.eq.s32.totalorder %s140, 0
      %s143 = sadd.s32 %s142, 1
      %s144 = scalar_select %p141, %s142, %s143
      %p147 = pneg %p141
      %p148 = scmp.eq.s32.totalorder %s20, 3
      %p149 = por %p147, %p148
      %p150 = scmp.ne.s32.totalorder %s142, %s145
      %p151 = scmp.eq.s32.totalorder %s20, 0
      %p152 = por %p150, %p151
      %p153 = scmp.ne.s32.totalorder %s142, %s145
      %p154 = scmp.eq.s32.totalorder %s25, 3
      %p155 = por %p153, %p154
      %p156 = scmp.ne.s32.totalorder %s145, %s146
      %p157 = scmp.eq.s32.totalorder %s25, 0
      %p158 = por %p156, %p157
      %p159 = scmp.ne.s32.totalorder %s145, %s146
      %p160 = scmp.eq.s32.totalorder %s26, 3
      %p161 = por %p159, %p160
      %p163 = scmp.ne.s32.totalorder %s146, %s162
      %p164 = scmp.eq.s32.totalorder %s26, 0
      %p165 = por %p163, %p164
      %p166 = scmp.le.s32.totalorder 1, %s20
      %p167 = scmp.lt.s32.totalorder %s20, 5
      %p168 = pnand %p166, %p167
      %p169 = pneg %p168
      // Predicated region
      $region9: #{residual_forward.5} parent=5 // pred_check
        _
      $region10: #{residual_forward.5} parent=5 // pred_check_branch
        %171 = sbr.rel (%p168) target = $region12
      $region11: #{residual_forward.5} parent=5 // pred_region
        %s172 = ssub.s32 %s20, 1
        // Predicated region
        $region13: #{residual_forward.5} parent=11 // pred_check
          %p173 = pneg %p81
        $region14: #{residual_forward.5} parent=11 // pred_check_branch
          %175 = sbr.rel (%p173) target = $region16
        $region15: #{residual_forward.5} parent=11 // pred_region
          %s177 = ssub.s32 16, 16
          %178 = vsyncadd [#allocation6], %s177
          %s180 = sshll.u32 [#allocation5], 4
          %s181 = int_to_ptr.vmem [resolvable:$true] %s180
          %183 = dma.hbm_to_vmem [thread:$0]  %s1, 16, %s181, [#allocation6]
        $region16: #{residual_forward.5} parent=11 // pred_fallthru
          _
        // Predicated region
        $region17: #{residual_forward.5} parent=11 // pred_check
          %p184 = pneg %p102
        $region18: #{residual_forward.5} parent=11 // pred_check_branch
          %186 = sbr.rel (%p184) target = $region20
        $region19: #{residual_forward.5} parent=11 // pred_region
          %s188 = ssub.s32 16, 16
          %189 = vsyncadd [#allocation6], %s188
          %s191 = sshll.u32 [#allocation7], 4
          %s192 = int_to_ptr.vmem [resolvable:$true] %s191
          %194 = dma.hbm_to_vmem [thread:$0]  %s2, 16, %s192, [#allocation6]
        $region20: #{residual_forward.5} parent=11 // pred_fallthru
          _
      $region12: #{residual_forward.5} parent=5 // pred_fallthru
        _
      %p195 = scmp.lt.s32.totalorder %s20, 4
      // Predicated region
      $region21: #{residual_forward.5} parent=5 // pred_check
        %p196 = pneg %p195
      $region22: #{residual_forward.5} parent=5 // pred_check_branch
        %198 = sbr.rel (%p196) target = $region24
      $region23: #{residual_forward.5} parent=5 // pred_region
        // Predicated region
        $region25: #{residual_forward.5} parent=23 // pred_check
          %p199 = pneg %p54
        $region26: #{residual_forward.5} parent=23 // pred_check_branch
          %201 = sbr.rel (%p199) target = $region28
        $region27: #{residual_forward.5} parent=23 // pred_region
          %s202 = sand.u32 %s44, 1
          %s203 = scalar_lea.sflag [#allocation3], %s202
          %s204 = sand.u32 %s44, 1
          %s205 = smul.addr %s204, 8
          %s206 = scalar_lea.vmem [#allocation2], %s205
          %s207 = smul.u32 2, %s28
          %s209 = ssub.s32 128, 128
          %210 = vsyncadd %s203, %s209
          %s211 = smul.addr %s27, 4
          %s212 = sadd.s32 %s207, %s211
          %s213 = smul.addr %s212, 64
          %s214 = scalar_lea.hbm %s0, %s213
          %s215 = sshll.u32 %s206, 4
          %s216 = int_to_ptr.vmem [resolvable:$true] %s215
          %221 = dma.hbm_to_vmem [thread:$0]  %s214, 128, %s216, %s203, 64, 64, 4
        $region28: #{residual_forward.5} parent=23 // pred_fallthru
          _
        // Predicated region
        $region29: #{residual_forward.5} parent=23 // pred_check
          %p222 = pneg %p124
        $region30: #{residual_forward.5} parent=23 // pred_check_branch
          %224 = sbr.rel (%p222) target = $region32
        $region31: #{residual_forward.5} parent=23 // pred_region
          %s225 = sand.u32 %s114, 1
          %s226 = scalar_lea.sflag [#allocation9], %s225
          %s227 = sand.u32 %s114, 1
          %s228 = smul.addr %s227, 8
          %s229 = scalar_lea.vmem [#allocation8], %s228
          %s230 = smul.u32 2, %s28
          %s232 = ssub.s32 128, 128
          %233 = vsyncadd %s226, %s232
          %s234 = smul.addr %s27, 4
          %s235 = sadd.s32 %s230, %s234
          %s236 = smul.addr %s235, 64
          %s237 = scalar_lea.hbm %s3, %s236
          %s238 = sshll.u32 %s229, 4
          %s239 = int_to_ptr.vmem [resolvable:$true] %s238
          %244 = dma.hbm_to_vmem [thread:$0]  %s237, 128, %s239, %s226, 64, 64, 4
        $region32: #{residual_forward.5} parent=23 // pred_fallthru
          _
      $region24: #{residual_forward.5} parent=5 // pred_fallthru
        _
      %p245 = scmp.le.s32.totalorder 1, %s20
      %p246 = scmp.lt.s32.totalorder %s20, 5
      %p247 = pnand %p245, %p246
      %p248 = pneg %p247
      // Predicated region
      $region33: #{residual_forward.5} parent=5 // pred_check
        _
      $region34: #{residual_forward.5} parent=5 // pred_check_branch
        %250 = sbr.rel (%p247) target = $region36
      $region35: #{residual_forward.5} parent=5 // pred_region
        %s251 = ssub.s32 %s20, 1
        %s252 = sand.u32 %s47, 1
        %s253 = scalar_lea.sflag [#allocation3], %s252
        %s254 = sand.u32 %s47, 1
        %s255 = smul.addr %s254, 8
        %s256 = scalar_lea.vmem [#allocation2], %s255
        // Predicated region
        $region37: #{residual_forward.5} parent=35 // pred_check
          %p257 = pneg %p60
        $region38: #{residual_forward.5} parent=35 // pred_check_branch
          %259 = sbr.rel (%p257) target = $region40
        $region39: #{residual_forward.5} parent=35 // pred_region
          %260 = dma.done %s253, 128
        $region40: #{residual_forward.5} parent=35 // pred_fallthru
          _
        // Predicated region
        $region41: #{residual_forward.5} parent=35 // pred_check
          %p261 = pneg %p81
        $region42: #{residual_forward.5} parent=35 // pred_check_branch
          %263 = sbr.rel (%p261) target = $region44
        $region43: #{residual_forward.5} parent=35 // pred_region
          %264 = dma.done [#allocation6], 16
        $region44: #{residual_forward.5} parent=35 // pred_fallthru
          _
        // Predicated region
        $region45: #{residual_forward.5} parent=35 // pred_check
          %p265 = pneg %p102
        $region46: #{residual_forward.5} parent=35 // pred_check_branch
          %267 = sbr.rel (%p265) target = $region48
        $region47: #{residual_forward.5} parent=35 // pred_region
          %268 = dma.done [#allocation6], 16
        $region48: #{residual_forward.5} parent=35 // pred_fallthru
          _
        %s269 = sand.u32 %s117, 1
        %s270 = scalar_lea.sflag [#allocation9], %s269
        %s271 = sand.u32 %s117, 1
        %s272 = smul.addr %s271, 8
        %s273 = scalar_lea.vmem [#allocation8], %s272
        // Predicated region
        $region49: #{residual_forward.5} parent=35 // pred_check
          %p274 = pneg %p130
        $region50: #{residual_forward.5} parent=35 // pred_check_branch
          %276 = sbr.rel (%p274) target = $region52
        $region51: #{residual_forward.5} parent=35 // pred_region
          %277 = dma.done %s270, 128
        $region52: #{residual_forward.5} parent=35 // pred_fallthru
          _
        %s278 = sand.u32 %s47, 1
        %s279 = scalar_lea.sflag [#allocation3], %s278
        %s280 = sand.u32 %s47, 1
        %s281 = smul.addr %s280, 8
        %s282 = scalar_lea.vmem [#allocation2], %s281
        %p283 = pneg %p60
        %p284 = pneg %p57
        %p285 = pneg %p81
        %p286 = pneg %p78
        %p287 = pneg %p102
        %p288 = pneg %p99
        %s289 = sand.u32 %s117, 1
        %s290 = scalar_lea.sflag [#allocation9], %s289
        %s291 = sand.u32 %s117, 1
        %s292 = smul.addr %s291, 8
        %s293 = scalar_lea.vmem [#allocation8], %s292
        %p294 = pneg %p130
        %p295 = pneg %p127
        %p296 = pneg %p158
        %p297 = pneg %p155
        %s298 = sand.u32 %s145, 1
        %s299 = scalar_lea.sflag [#allocation4], %s298
        %s300 = sand.u32 %s145, 1
        %s301 = smul.addr %s300, 8
        %s302 = scalar_lea.vmem [#allocation10], %s301
        %s303 = smul.u32 2, %s30
        %s304 = smul.u32 2, %s30
        %s305 = smul.u32 2, %s30
        %v306 = vld [vmem:[%s256] sm:$0xf]
        %v307 = vld [vmem:[%s256 + $0x4] sm:$0xf]
        %v308 = vunpack.c.l.bf16 %v306
        %v309 = vunpack.c.l.bf16 %v307
        %v310 = vld [vmem:[#allocation5] sm:$0x1]
        %v312 = vlaneseq
        %v313 = vshrl.u32 %v312, 7
        %v314 = vsub.s32 0, %v313
        %v315 = vrot.slane %v310, %v314
        %v317 = vmul.f32 %v308, %v315
        %v318 = vmul.f32 %v309, %v315
        %v319 = vld [vmem:[#allocation7] sm:$0x1]
        %v321 = vlaneseq
        %v322 = vshrl.u32 %v321, 7
        %v323 = vsub.s32 0, %v322
        %v324 = vrot.slane %v319, %v323
        %v326 = vadd.f32 %v317, %v324
        %v327 = vadd.f32 %v318, %v324
        %v328 = vld [vmem:[%s273] sm:$0xf]
        %v329 = vld [vmem:[%s273 + $0x4] sm:$0xf]
        %v330 = vunpack.c.l.bf16 %v328
        %v331 = vunpack.c.l.bf16 %v329
        %v332 = vadd.f32 %v326, %v330
        %v333 = vadd.f32 %v327, %v331
        %v334 = vmax.f32 %v332, 0.0
        %v335 = vmax.f32 %v333, 0.0
        %v336 = vpack.c.bf16 %v335, %v334
        %v338 = vunpack.c.l.b16 %v336
        %v339 = vunpack.c.h.b16 %v336
        %v340 = vpack.c.b16 %v338, %v338
        %v341 = vpack.c.b16 %v339, %v339
        %344 = vst [vmem:[%s302] sm:$0xf] %v340
        %345 = vst [vmem:[%s302 + $0x4] sm:$0xf] %v341
        %s346 = sand.u32 %s145, 1
        %s347 = scalar_lea.sflag [#allocation4], %s346
        %s348 = sand.u32 %s145, 1
        %s349 = smul.addr %s348, 8
        %s350 = scalar_lea.vmem [#allocation10], %s349
        // Predicated region
        $region53: #{residual_forward.5} parent=35 // pred_check
          %p351 = pneg %p155
        $region54: #{residual_forward.5} parent=35 // pred_check_branch
          %353 = sbr.rel (%p351) target = $region56
        $region55: #{residual_forward.5} parent=35 // pred_region
          %s354 = smul.u32 2, %s30
          %s356 = ssub.s32 128, 128
          %357 = vsyncadd %s347, %s356
          %s358 = smul.addr %s29, 4
          %s359 = sadd.s32 %s354, %s358
          %s360 = smul.addr %s359, 64
          %s361 = scalar_lea.hbm %s4, %s360
          %s362 = sshll.u32 %s350, 4
          %s363 = int_to_ptr.vmem [resolvable:$true] %s362
          %368 = dma.vmem_to_hbm [thread:$0]  %s363, 128, %s361, %s347, 64, 64, 4
        $region56: #{residual_forward.5} parent=35 // pred_fallthru
          _
      $region36: #{residual_forward.5} parent=5 // pred_fallthru
        _
      %p369 = scmp.le.s32.totalorder 2, %s20
      // Predicated region
      $region57: #{residual_forward.5} parent=5 // pred_check
        %p370 = pneg %p369
      $region58: #{residual_forward.5} parent=5 // pred_check_branch
        %372 = sbr.rel (%p370) target = $region60
      $region59: #{residual_forward.5} parent=5 // pred_region
        %s373 = ssub.s32 %s20, 2
        // Predicated region
        $region61: #{residual_forward.5} parent=59 // pred_check
          %p374 = pneg %p161
        $region62: #{residual_forward.5} parent=59 // pred_check_branch
          %376 = sbr.rel (%p374) target = $region64
        $region63: #{residual_forward.5} parent=59 // pred_region
          %s377 = sand.u32 %s146, 1
          %s378 = scalar_lea.sflag [#allocation4], %s377
          %s379 = sand.u32 %s146, 1
          %s380 = smul.addr %s379, 8
          %s381 = scalar_lea.vmem [#allocation10], %s380
          %382 = dma.done %s378, 128
        $region64: #{residual_forward.5} parent=59 // pred_fallthru
          _
      $region60: #{residual_forward.5} parent=5 // pred_fallthru
        _
    $region6: #{residual_forward.5} parent=1 // loop_footer
      %s24 = sadd.s32 1, %s20
    $region7: #{residual_forward.5} parent=1 // loop_footer_branch
      %19 = sbr.rel target = $region3
    $region8: #{residual_forward.5} parent=1 // loop_exit
      _
    %383 = vsyncpa [#allocation3], 1
    %s384 = scalar_lea.sflag [#allocation3], 1
    %385 = vsyncpa %s384, 1
    %386 = vsyncpa [#allocation6], 1
    %387 = vsyncpa [#allocation9], 1
    %s388 = scalar_lea.sflag [#allocation9], 1
    %389 = vsyncpa %s388, 1
    %390 = vsyncpa [#allocation4], 1
    %s391 = scalar_lea.sflag [#allocation4], 1
    %392 = vsyncpa %s391, 1

// kernel: residual_forward.4
$region0: #{residual_forward.4}
  #allocation0 [shape = 'u32[]', space=smem, size = 0x4, offset = 0x4, fixed_abs, tag = 'smem constant byte address 0x4 - core index']
  #allocation1 [shape = 'u32[144,128]{1,0:T(1,128)}', space=vmem, size = 0x12000, scoped, tag = 'internal scratch']
  %s0 = inlined_call_operand.hbm [shape: bf16[2,32,128], index: 0, kind: input, shape index: {}, may-alias: {0,1,2}]
  %s1 = inlined_call_operand.hbm [shape: bf16[2,32,128], index: 1, kind: input, shape index: {}, may-alias: {0,1,2}]
  %s2 = inlined_call_operand.hbm [shape: bf16[2,32,128], index: 2, kind: input, shape index: {}, may-alias: {0,1,2}]
  %s3 = inlined_call_operand.hbm [shape: f32[1,128], index: 3, kind: input, shape index: {}]
  %s4 = inlined_call_operand.hbm [shape: f32[1,128], index: 4, kind: input, shape index: {}]
  %s5 = inlined_call_operand.hbm [shape: bf16[384,128], index: 5, kind: input, shape index: {}]
  %s6 = inlined_call_operand.hbm [shape: f32[1,128], index: 6, kind: input, shape index: {}]
  %s7 = inlined_call_operand.hbm [shape: bf16[2,32,128], index: 7, kind: output, shape index: {0}]
  %s8 = inlined_call_operand.hbm [shape: f32[2,16,128], index: 8, kind: output, shape index: {1}]
  %9 = xla_tuple %s7, %s8
  %s10 = sld [smem:[#allocation0]]
  $region97: #{residual_forward.4} parent=0
    _
  %s12 = ssub.s32 1, %s10
  %s13 = scalar_select 0, %s12, %s10
  $region1: #{residual_forward.4} parent=0
    #allocation2 [shape = 'u8[8192]{0}', space=vmem, size = 0x2000, scoped, tag = 'input window, operand 0']
    #allocation3 [shape = 's32[2]{0}', space=sflag, size = 0x8, scoped, tag = 'scoped memory for residual_forward.4']
    #allocation4 [shape = 's32[2]{0}', space=sflag, size = 0x8, scoped, tag = 'scoped memory for residual_forward.4']
    #allocation5 [shape = 'u8[8192]{0}', space=vmem, size = 0x2000, scoped, tag = 'input window, operand 1']
    #allocation6 [shape = 's32[2]{0}', space=sflag, size = 0x8, scoped, tag = 'scoped memory for residual_forward.4']
    #allocation7 [shape = 'u8[8192]{0}', space=vmem, size = 0x2000, scoped, tag = 'input window, operand 2']
    #allocation8 [shape = 'u8[512]{0}', space=vmem, size = 0x400, scoped, tag = 'input window, operand 3, single buffered']
    #allocation9 [shape = 's32[1]{0}', space=sflag, size = 0x4, scoped, tag = 'scoped memory for residual_forward.4']
    #allocation10 [shape = 'u8[512]{0}', space=vmem, size = 0x400, scoped, tag = 'input window, operand 4, single buffered']
    #allocation11 [shape = 'u8[98304]{0}', space=vmem, size = 0x18000, scoped, tag = 'input window, operand 5, single buffered']
    #allocation12 [shape = 's32[1]{0}', space=sflag, size = 0x4, scoped, tag = 'scoped memory for residual_forward.4']
    #allocation13 [shape = 'u8[512]{0}', space=vmem, size = 0x400, scoped, tag = 'input window, operand 6, single buffered']
    #allocation14 [shape = 'u8[8192]{0}', space=vmem, size = 0x2000, scoped, tag = 'output window, operand 0']
    #allocation15 [shape = 'u8[8192]{0}', space=vmem, size = 0x2000, scoped, tag = 'output window, operand 1']
    #allocation16 [shape = 's32[2]{0}', space=sflag, size = 0x8, scoped, tag = 'scoped memory for residual_forward.4']
    %14 = vsyncpa [#allocation3], 0
    %s15 = scalar_lea.sflag [#allocation3], 1
    %16 = vsyncpa %s15, 0
    %17 = vsyncpa [#allocation6], 0
    %s18 = scalar_lea.sflag [#allocation6], 1
    %19 = vsyncpa %s18, 0
    %20 = vsyncpa [#allocation9], 0
    %21 = vsyncpa [#allocation12], 0
    %22 = vsyncpa [#allocation4], 0
    %s23 = scalar_lea.sflag [#allocation4], 1
    %24 = vsyncpa %s23, 0
    %25 = vsyncpa [#allocation16], 0
    %s26 = scalar_lea.sflag [#allocation16], 1
    %27 = vsyncpa %s26, 0
    loop: start=0, step=1, limit=6
    $region2: #{residual_forward.4} parent=1 // loop_pre_header
      _
    $region3: #{residual_forward.4} parent=1 // loop_header
      %s29 = sphi 0, %s33
      %p30 = scmp.ge.s32.totalorder %s29, 6
      %s36 = sphi 0, %s48
      %s37 = sphi 0, %s44
      %s38 = sphi 0, %s36
      %s39 = sphi 0, %s37
      %s40 = sphi 0, %s38
      %s41 = sphi 0, %s39
      %s53 = sphi 0, %s55
      %s56 = sphi 0, %s53
      %s57 = sphi 0, %s56
      %s73 = sphi 0, %s57
      %s87 = sphi 0, %s89
      %s90 = sphi 0, %s87
      %s91 = sphi 0, %s90
      %s107 = sphi 0, %s91
      %s121 = sphi 0, %s123
      %s124 = sphi 0, %s121
      %s125 = sphi 0, %s124
      %s141 = sphi 0, %s125
      %s145 = sphi 0, %s145
      %s147 = sphi 0, %s145
      %s148 = sphi 0, %s147
      %s162 = sphi 0, %s148
      %s166 = sphi 0, %s166
      %s168 = sphi 0, %s166
      %s169 = sphi 0, %s168
      %s183 = sphi 0, %s169
      %s187 = sphi 0, %s187
      %s189 = sphi 0, %s187
      %s190 = sphi 0, %s189
      %s204 = sphi 0, %s190
      %s208 = sphi 0, %s208
      %s210 = sphi 0, %s208
      %s211 = sphi 0, %s210
      %s225 = sphi 0, %s211
      %s233 = sphi 0, %s235
      %s236 = sphi 0, %s233
      %s237 = sphi 0, %s236
      %s253 = sphi 0, %s237
      %s261 = sphi 0, %s263
      %s264 = sphi 0, %s261
      %s265 = sphi 0, %s264
      %s281 = sphi 0, %s265
    $region4: #{residual_forward.4} parent=1 // loop_header_branch
      %32 = sbr.rel (%p30) target = $region8
    $region5: #{residual_forward.4} parent=1 // loop_body
      %s34 = ssub.s32 %s29, 1
      %s35 = ssub.s32 %s29, 2
      %s42 = sadd.s32 1, %s37
      %p43 = scmp.ge.s32.totalorder %s42, 2
      %s44 = scalar_select %p43, 0, %s42
      %s45 = sadd.s32 1, %s36
      %s46 = scalar_select %p43, %s45, %s36
      %p47 = scmp.ge.s32.totalorder %s46, 2
      %s48 = scalar_select %p47, 0, %s46
      %s49 = ssub.s32 %s36, %s48
      %s50 = ssub.s32 %s37, %s44
      %s51 = sor.u32 %s49, %s50
      %p52 = scmp.eq.s32.totalorder %s51, 0
      %s54 = sadd.s32 %s53, 1
      %s55 = scalar_select %p52, %s53, %s54
      %p58 = pneg %p52
      %p59 = scmp.eq.s32.totalorder %s29, 3
      %p60 = por %p58, %p59
      %p61 = scmp.ne.s32.totalorder %s53, %s56
      %p62 = scmp.eq.s32.totalorder %s29, 0
      %p63 = por %p61, %p62
      %p64 = scmp.ne.s32.totalorder %s53, %s56
      %p65 = scmp.eq.s32.totalorder %s34, 3
      %p66 = por %p64, %p65
      %p67 = scmp.ne.s32.totalorder %s56, %s57
      %p68 = scmp.eq.s32.totalorder %s34, 0
      %p69 = por %p67, %p68
      %p70 = scmp.ne.s32.totalorder %s56, %s57
      %p71 = scmp.eq.s32.totalorder %s35, 3
      %p72 = por %p70, %p71
      %p74 = scmp.ne.s32.totalorder %s57, %s73
      %p75 = scmp.eq.s32.totalorder %s35, 0
      %p76 = por %p74, %p75
      %s77 = ssub.s32 %s37, 1
      %p78 = scmp.gt.s32.totalorder %s77, 0
      %s79 = scalar_select %p78, %s77, 0
      %s80 = ssub.s32 %s44, 1
      %p81 = scmp.gt.s32.totalorder %s80, 0
      %s82 = scalar_select %p81, %s80, 0
      %s83 = ssub.s32 %s36, %s48
      %s84 = ssub.s32 %s79, %s82
      %s85 = sor.u32 %s83, %s84
      %p86 = scmp.eq.s32.totalorder %s85, 0
      %s88 = sadd.s32 %s87, 1
      %s89 = scalar_select %p86, %s87, %s88
      %p92 = pneg %p86
      %p93 = scmp.eq.s32.totalorder %s29, 3
      %p94 = por %p92, %p93
      %p95 = scmp.ne.s32.totalorder %s87, %s90
      %p96 = scmp.eq.s32.totalorder %s29, 0
      %p97 = por %p95, %p96
      %p98 = scmp.ne.s32.totalorder %s87, %s90
      %p99 = scmp.eq.s32.totalorder %s34, 3
      %p100 = por %p98, %p99
      %p101 = scmp.ne.s32.totalorder %s90, %s91
      %p102 = scmp.eq.s32.totalorder %s34, 0
      %p103 = por %p101, %p102
      %p104 = scmp.ne.s32.totalorder %s90, %s91
      %p105 = scmp.eq.s32.totalorder %s35, 3
      %p106 = por %p104, %p105
      %p108 = scmp.ne.s32.totalorder %s91, %s107
      %p109 = scmp.eq.s32.totalorder %s35, 0
      %p110 = por %p108, %p109
      %s111 = sadd.s32 %s37, 1
      %p112 = scmp.lt.s32.totalorder %s111, 1
      %s113 = scalar_select %p112, %s111, 1
      %s114 = sadd.s32 %s44, 1
      %p115 = scmp.lt.s32.totalorder %s114, 1
      %s116 = scalar_select %p115, %s114, 1
      %s117 = ssub.s32 %s36, %s48
      %s118 = ssub.s32 %s113, %s116
      %s119 = sor.u32 %s117, %s118
      %p120 = scmp.eq.s32.totalorder %s119, 0
      %s122 = sadd.s32 %s121, 1
      %s123 = scalar_select %p120, %s121, %s122
      %p126 = pneg %p120
      %p127 = scmp.eq.s32.totalorder %s29, 3
      %p128 = por %p126, %p127
      %p129 = scmp.ne.s32.totalorder %s121, %s124
      %p130 = scmp.eq.s32.totalorder %s29, 0
      %p131 = por %p129, %p130
      %p132 = scmp.ne.s32.totalorder %s121, %s124
      %p133 = scmp.eq.s32.totalorder %s34, 3
      %p134 = por %p132, %p133
      %p135 = scmp.ne.s32.totalorder %s124, %s125
      %p136 = scmp.eq.s32.totalorder %s34, 0
      %p137 = por %p135, %p136
      %p138 = scmp.ne.s32.totalorder %s124, %s125
      %p139 = scmp.eq.s32.totalorder %s35, 3
      %p140 = por %p138, %p139
      %p142 = scmp.ne.s32.totalorder %s125, %s141
      %p143 = scmp.eq.s32.totalorder %s35, 0
      %p144 = por %p142, %p143
      %s146 = sadd.s32 %s145, 1
      %p149 = scmp.eq.s32.totalorder %s29, 3
      %p150 = scmp.ne.s32.totalorder %s145, %s147
      %p151 = scmp.eq.s32.totalorder %s29, 0
      %p152 = por %p150, %p151
      %p153 = scmp.ne.s32.totalorder %s145, %s147
      %p154 = scmp.eq.s32.totalorder %s34, 3
      %p155 = por %p153, %p154
      %p156 = scmp.ne.s32.totalorder %s147, %s148
      %p157 = scmp.eq.s32.totalorder %s34, 0
      %p158 = por %p156, %p157
      %p159 = scmp.ne.s32.totalorder %s147, %s148
      %p160 = scmp.eq.s32.totalorder %s35, 3
      %p161 = por %p159, %p160
      %p163 = scmp.ne.s32.totalorder %s148, %s162
      %p164 = scmp.eq.s32.totalorder %s35, 0
      %p165 = por %p163, %p164
      %s167 = sadd.s32 %s166, 1
      %p170 = scmp.eq.s32.totalorder %s29, 3
      %p171 = scmp.ne.s32.totalorder %s166, %s168
      %p172 = scmp.eq.s32.totalorder %s29, 0
      %p173 = por %p171, %p172
      %p174 = scmp.ne.s32.totalorder %s166, %s168
      %p175 = scmp.eq.s32.totalorder %s34, 3
      %p176 = por %p174, %p175
      %p177 = scmp.ne.s32.totalorder %s168, %s169
      %p178 = scmp.eq.s32.totalorder %s34, 0
      %p179 = por %p177, %p178
      %p180 = scmp.ne.s32.totalorder %s168, %s169
      %p181 = scmp.eq.s32.totalorder %s35, 3
      %p182 = por %p180, %p181
      %p184 = scmp.ne.s32.totalorder %s169, %s183
      %p185 = scmp.eq.s32.totalorder %s35, 0
      %p186 = por %p184, %p185
      %s188 = sadd.s32 %s187, 1
      %p191 = scmp.eq.s32.totalorder %s29, 3
      %p192 = scmp.ne.s32.totalorder %s187, %s189
      %p193 = scmp.eq.s32.totalorder %s29, 0
      %p194 = por %p192, %p193
      %p195 = scmp.ne.s32.totalorder %s187, %s189
      %p196 = scmp.eq.s32.totalorder %s34, 3
      %p197 = por %p195, %p196
      %p198 = scmp.ne.s32.totalorder %s189, %s190
      %p199 = scmp.eq.s32.totalorder %s34, 0
      %p200 = por %p198, %p199
      %p201 = scmp.ne.s32.totalorder %s189, %s190
      %p202 = scmp.eq.s32.totalorder %s35, 3
      %p203 = por %p201, %p202
      %p205 = scmp.ne.s32.totalorder %s190, %s204
      %p206 = scmp.eq.s32.totalorder %s35, 0
      %p207 = por %p205, %p206
      %s209 = sadd.s32 %s208, 1
      %p212 = scmp.eq.s32.totalorder %s29, 3
      %p213 = scmp.ne.s32.totalorder %s208, %s210
      %p214 = scmp.eq.s32.totalorder %s29, 0
      %p215 = por %p213, %p214
      %p216 = scmp.ne.s32.totalorder %s208, %s210
      %p217 = scmp.eq.s32.totalorder %s34, 3
      %p218 = por %p216, %p217
      %p219 = scmp.ne.s32.totalorder %s210, %s211
      %p220 = scmp.eq.s32.totalorder %s34, 0
      %p221 = por %p219, %p220
      %p222 = scmp.ne.s32.totalorder %s210, %s211
      %p223 = scmp.eq.s32.totalorder %s35, 3
      %p224 = por %p222, %p223
      %p226 = scmp.ne.s32.totalorder %s211, %s225
      %p227 = scmp.eq.s32.totalorder %s35, 0
      %p228 = por %p226, %p227
      %s229 = ssub.s32 %s36, %s48
      %s230 = ssub.s32 %s37, %s44
      %s231 = sor.u32 %s229, %s230
      %p232 = scmp.eq.s32.totalorder %s231, 0
      %s234 = sadd.s32 %s233, 1
      %s235 = scalar_select %p232, %s233, %s234
      %p238 = pneg %p232
      %p239 = scmp.eq.s32.totalorder %s29, 3
      %p240 = por %p238, %p239
      %p241 = scmp.ne.s32.totalorder %s233, %s236
      %p242 = scmp.eq.s32.totalorder %s29, 0
      %p243 = por %p241, %p242
      %p244 = scmp.ne.s32.totalorder %s233, %s236
      %p245 = scmp.eq.s32.totalorder %s34, 3
      %p246 = por %p244, %p245
      %p247 = scmp.ne.s32.totalorder %s236, %s237
      %p248 = scmp.eq.s32.totalorder %s34, 0
      %p249 = por %p247, %p248
      %p250 = scmp.ne.s32.totalorder %s236, %s237
      %p251 = scmp.eq.s32.totalorder %s35, 3
      %p252 = por %p250, %p251
      %p254 = scmp.ne.s32.totalorder %s237, %s253
      %p255 = scmp.eq.s32.totalorder %s35, 0
      %p256 = por %p254, %p255
      %s257 = ssub.s32 %s36, %s48
      %s258 = ssub.s32 %s37, %s44
      %s259 = sor.u32 %s257, %s258
      %p260 = scmp.eq.s32.totalorder %s259, 0
      %s262 = sadd.s32 %s261, 1
      %s263 = scalar_select %p260, %s261, %s262
      %p266 = pneg %p260
      %p267 = scmp.eq.s32.totalorder %s29, 3
      %p268 = por %p266, %p267
      %p269 = scmp.ne.s32.totalorder %s261, %s264
      %p270 = scmp.eq.s32.totalorder %s29, 0
      %p271 = por %p269, %p270
      %p272 = scmp.ne.s32.totalorder %s261, %s264
      %p273 = scmp.eq.s32.totalorder %s34, 3
      %p274 = por %p272, %p273
      %p275 = scmp.ne.s32.totalorder %s264, %s265
      %p276 = scmp.eq.s32.totalorder %s34, 0
      %p277 = por %p275, %p276
      %p278 = scmp.ne.s32.totalorder %s264, %s265
      %p279 = scmp.eq.s32.totalorder %s35, 3
      %p280 = por %p278, %p279
      %p282 = scmp.ne.s32.totalorder %s265, %s281
      %p283 = scmp.eq.s32.totalorder %s35, 0
      %p284 = por %p282, %p283
      %p285 = scmp.le.s32.totalorder 1, %s29
      %p286 = scmp.lt.s32.totalorder %s29, 5
      %p287 = pnand %p285, %p286
      %p288 = pneg %p287
      // Predicated region
      $region9: #{residual_forward.4} parent=5 // pred_check
        _
      $region10: #{residual_forward.4} parent=5 // pred_check_branch
        %290 = sbr.rel (%p287) target = $region12
      $region11: #{residual_forward.4} parent=5 // pred_region
        %s291 = ssub.s32 %s29, 1
        // Predicated region
        $region13: #{residual_forward.4} parent=11 // pred_check
          %p292 = pneg %p158
        $region14: #{residual_forward.4} parent=11 // pred_check_branch
          %294 = sbr.rel (%p292) target = $region16
        $region15: #{residual_forward.4} parent=11 // pred_region
          %s296 = ssub.s32 16, 16
          %297 = vsyncadd [#allocation9], %s296
          %s299 = sshll.u32 [#allocation8], 4
          %s300 = int_to_ptr.vmem [resolvable:$true] %s299
          %302 = dma.hbm_to_vmem [thread:$0]  %s3, 16, %s300, [#allocation9]
        $region16: #{residual_forward.4} parent=11 // pred_fallthru
          _
        // Predicated region
        $region17: #{residual_forward.4} parent=11 // pred_check
          %p303 = pneg %p179
        $region18: #{residual_forward.4} parent=11 // pred_check_branch
          %305 = sbr.rel (%p303) target = $region20
        $region19: #{residual_forward.4} parent=11 // pred_region
          %s307 = ssub.s32 16, 16
          %308 = vsyncadd [#allocation9], %s307
          %s310 = sshll.u32 [#allocation10], 4
          %s311 = int_to_ptr.vmem [resolvable:$true] %s310
          %313 = dma.hbm_to_vmem [thread:$0]  %s4, 16, %s311, [#allocation9]
        $region20: #{residual_forward.4} parent=11 // pred_fallthru
          _
        // Predicated region
        $region21: #{residual_forward.4} parent=11 // pred_check
          %p314 = pneg %p200
        $region22: #{residual_forward.4} parent=11 // pred_check_branch
          %316 = sbr.rel (%p314) target = $region24
        $region23: #{residual_forward.4} parent=11 // pred_region
          %s318 = ssub.s32 3072, 3072
          %319 = vsyncadd [#allocation12], %s318
          %s320 = sshll.u32 [#allocation11], 4
          %s321 = int_to_ptr.vmem [resolvable:$true] %s320
          %326 = dma.hbm_to_vmem [thread:$0]  %s5, 3072, %s321, [#allocation12], 64, 64, 4
        $region24: #{residual_forward.4} parent=11 // pred_fallthru
          _
        // Predicated region
        $region25: #{residual_forward.4} parent=11 // pred_check
          %p327 = pneg %p221
        $region26: #{residual_forward.4} parent=11 // pred_check_branch
          %329 = sbr.rel (%p327) target = $region28
        $region27: #{residual_forward.4} parent=11 // pred_region
          %s331 = ssub.s32 16, 16
          %332 = vsyncadd [#allocation12], %s331
          %s334 = sshll.u32 [#allocation13], 4
          %s335 = int_to_ptr.vmem [resolvable:$true] %s334
          %337 = dma.hbm_to_vmem [thread:$0]  %s6, 16, %s335, [#allocation12]
        $region28: #{residual_forward.4} parent=11 // pred_fallthru
          _
      $region12: #{residual_forward.4} parent=5 // pred_fallthru
        _
      %p338 = scmp.lt.s32.totalorder %s29, 4
      // Predicated region
      $region29: #{residual_forward.4} parent=5 // pred_check
        %p339 = pneg %p338
      $region30: #{residual_forward.4} parent=5 // pred_check_branch
        %341 = sbr.rel (%p339) target = $region32
      $region31: #{residual_forward.4} parent=5 // pred_region
        // Predicated region
        $region33: #{residual_forward.4} parent=31 // pred_check
          %p342 = pneg %p63
        $region34: #{residual_forward.4} parent=31 // pred_check_branch
          %344 = sbr.rel (%p342) target = $region36
        $region35: #{residual_forward.4} parent=31 // pred_region
          %s345 = sand.u32 %s53, 1
          %s346 = scalar_lea.sflag [#allocation3], %s345
          %s347 = sand.u32 %s53, 1
          %s348 = smul.addr %s347, 8
          %s349 = scalar_lea.vmem [#allocation2], %s348
          %s350 = smul.u32 2, %s37
          %s352 = ssub.s32 128, 128
          %353 = vsyncadd %s346, %s352
          %s354 = smul.addr %s36, 4
          %s355 = sadd.s32 %s350, %s354
          %s356 = smul.addr %s355, 64
          %s357 = scalar_lea.hbm %s0, %s356
          %s358 = sshll.u32 %s349, 4
          %s359 = int_to_ptr.vmem [resolvable:$true] %s358
          %364 = dma.hbm_to_vmem [thread:$0]  %s357, 128, %s359, %s346, 64, 64, 4
        $region36: #{residual_forward.4} parent=31 // pred_fallthru
          _
        // Predicated region
        $region37: #{residual_forward.4} parent=31 // pred_check
          %p365 = pneg %p97
        $region38: #{residual_forward.4} parent=31 // pred_check_branch
          %367 = sbr.rel (%p365) target = $region40
        $region39: #{residual_forward.4} parent=31 // pred_region
          %s368 = sand.u32 %s29, 1
          %s369 = scalar_lea.sflag [#allocation6], %s368
          %s370 = sand.u32 %s87, 1
          %s371 = smul.addr %s370, 8
          %s372 = scalar_lea.vmem [#allocation5], %s371
          %s373 = ssub.s32 %s37, 1
          %p374 = scmp.gt.s32.totalorder %s373, 0
          %s375 = scalar_select %p374, %s373, 0
          %s376 = smul.u32 2, %s375
          %s378 = ssub.s32 128, 128
          %379 = vsyncadd %s369, %s378
          %s380 = smul.addr %s36, 4
          %s381 = sadd.s32 %s376, %s380
          %s382 = smul.addr %s381, 64
          %s383 = scalar_lea.hbm %s1, %s382
          %s384 = sshll.u32 %s372, 4
          %s385 = int_to_ptr.vmem [resolvable:$true] %s384
          %390 = dma.hbm_to_vmem [thread:$0]  %s383, 128, %s385, %s369, 64, 64, 4
        $region40: #{residual_forward.4} parent=31 // pred_fallthru
          _
        // Predicated region
        $region41: #{residual_forward.4} parent=31 // pred_check
          %p391 = pneg %p131
        $region42: #{residual_forward.4} parent=31 // pred_check_branch
          %393 = sbr.rel (%p391) target = $region44
        $region43: #{residual_forward.4} parent=31 // pred_region
          %s394 = sand.u32 %s29, 1
          %s395 = scalar_lea.sflag [#allocation6], %s394
          %s396 = sand.u32 %s121, 1
          %s397 = smul.addr %s396, 8
          %s398 = scalar_lea.vmem [#allocation7], %s397
          %s399 = sadd.s32 %s37, 1
          %p400 = scmp.lt.s32.totalorder %s399, 1
          %s401 = scalar_select %p400, %s399, 1
          %s402 = smul.u32 2, %s401
          %s404 = ssub.s32 128, 128
          %405 = vsyncadd %s395, %s404
          %s406 = smul.addr %s36, 4
          %s407 = sadd.s32 %s402, %s406
          %s408 = smul.addr %s407, 64
          %s409 = scalar_lea.hbm %s2, %s408
          %s410 = sshll.u32 %s398, 4
          %s411 = int_to_ptr.vmem [resolvable:$true] %s410
          %416 = dma.hbm_to_vmem [thread:$0]  %s409, 128, %s411, %s395, 64, 64, 4
        $region44: #{residual_forward.4} parent=31 // pred_fallthru
          _
      $region32: #{residual_forward.4} parent=5 // pred_fallthru
        _
      %p417 = scmp.le.s32.totalorder 1, %s29
      %p418 = scmp.lt.s32.totalorder %s29, 5
      %p419 = pnand %p417, %p418
      %p420 = pneg %p419
      // Predicated region
      $region45: #{residual_forward.4} parent=5 // pred_check
        _
      $region46: #{residual_forward.4} parent=5 // pred_check_branch
        %422 = sbr.rel (%p419) target = $region48
      $region47: #{residual_forward.4} parent=5 // pred_region
        %s423 = ssub.s32 %s29, 1
        %s424 = sand.u32 %s56, 1
        %s425 = scalar_lea.sflag [#allocation3], %s424
        %s426 = sand.u32 %s56, 1
        %s427 = smul.addr %s426, 8
        %s428 = scalar_lea.vmem [#allocation2], %s427
        // Predicated region
        $region49: #{residual_forward.4} parent=47 // pred_check
          %p429 = pneg %p69
        $region50: #{residual_forward.4} parent=47 // pred_check_branch
          %431 = sbr.rel (%p429) target = $region52
        $region51: #{residual_forward.4} parent=47 // pred_region
          %432 = dma.done %s425, 128
        $region52: #{residual_forward.4} parent=47 // pred_fallthru
          _
        %s433 = sand.u32 %s34, 1
        %s434 = scalar_lea.sflag [#allocation6], %s433
        %s435 = sand.u32 %s90, 1
        %s436 = smul.addr %s435, 8
        %s437 = scalar_lea.vmem [#allocation5], %s436
        // Predicated region
        $region53: #{residual_forward.4} parent=47 // pred_check
          %p438 = pneg %p103
        $region54: #{residual_forward.4} parent=47 // pred_check_branch
          %440 = sbr.rel (%p438) target = $region56
        $region55: #{residual_forward.4} parent=47 // pred_region
          %441 = dma.done %s434, 128
        $region56: #{residual_forward.4} parent=47 // pred_fallthru
          _
        %s442 = sand.u32 %s34, 1
        %s443 = scalar_lea.sflag [#allocation6], %s442
        %s444 = sand.u32 %s124, 1
        %s445 = smul.addr %s444, 8
        %s446 = scalar_lea.vmem [#allocation7], %s445
        // Predicated region
        $region57: #{residual_forward.4} parent=47 // pred_check
          %p447 = pneg %p137
        $region58: #{residual_forward.4} parent=47 // pred_check_branch
          %449 = sbr.rel (%p447) target = $region60
        $region59: #{residual_forward.4} parent=47 // pred_region
          %450 = dma.done %s443, 128
        $region60: #{residual_forward.4} parent=47 // pred_fallthru
          _
        // Predicated region
        $region61: #{residual_forward.4} parent=47 // pred_check
          %p451 = pneg %p158
        $region62: #{residual_forward.4} parent=47 // pred_check_branch
          %453 = sbr.rel (%p451) target = $region64
        $region63: #{residual_forward.4} parent=47 // pred_region
          %454 = dma.done [#allocation9], 16
        $region64: #{residual_forward.4} parent=47 // pred_fallthru
          _
        // Predicated region
        $region65: #{residual_forward.4} parent=47 // pred_check
          %p455 = pneg %p179
        $region66: #{residual_forward.4} parent=47 // pred_check_branch
          %457 = sbr.rel (%p455) target = $region68
        $region67: #{residual_forward.4} parent=47 // pred_region
          %458 = dma.done [#allocation9], 16
        $region68: #{residual_forward.4} parent=47 // pred_fallthru
          _
        // Predicated region
        $region69: #{residual_forward.4} parent=47 // pred_check
          %p459 = pneg %p200
        $region70: #{residual_forward.4} parent=47 // pred_check_branch
          %461 = sbr.rel (%p459) target = $region72
        $region71: #{residual_forward.4} parent=47 // pred_region
          %462 = dma.done [#allocation12], 3072
        $region72: #{residual_forward.4} parent=47 // pred_fallthru
          _
        // Predicated region
        $region73: #{residual_forward.4} parent=47 // pred_check
          %p463 = pneg %p221
        $region74: #{residual_forward.4} parent=47 // pred_check_branch
          %465 = sbr.rel (%p463) target = $region76
        $region75: #{residual_forward.4} parent=47 // pred_region
          %466 = dma.done [#allocation12], 16
        $region76: #{residual_forward.4} parent=47 // pred_fallthru
          _
        %s467 = sand.u32 %s56, 1
        %s468 = scalar_lea.sflag [#allocation3], %s467
        %s469 = sand.u32 %s56, 1
        %s470 = smul.addr %s469, 8
        %s471 = scalar_lea.vmem [#allocation2], %s470
        %p472 = pneg %p69
        %p473 = pneg %p66
        %s474 = sand.u32 %s34, 1
        %s475 = scalar_lea.sflag [#allocation6], %s474
        %s476 = sand.u32 %s90, 1
        %s477 = smul.addr %s476, 8
        %s478 = scalar_lea.vmem [#allocation5], %s477
        %p479 = pneg %p103
        %p480 = pneg %p100
        %s481 = sand.u32 %s34, 1
        %s482 = scalar_lea.sflag [#allocation6], %s481
        %s483 = sand.u32 %s124, 1
        %s484 = smul.addr %s483, 8
        %s485 = scalar_lea.vmem [#allocation7], %s484
        %p486 = pneg %p137
        %p487 = pneg %p134
        %p488 = pneg %p158
        %p489 = pneg %p155
        %p490 = pneg %p179
        %p491 = pneg %p176
        %p492 = pneg %p200
        %p493 = pneg %p197
        %p494 = pneg %p221
        %p495 = pneg %p218
        %p496 = pneg %p249
        %p497 = pneg %p246
        %s498 = sand.u32 %s236, 1
        %s499 = scalar_lea.sflag [#allocation4], %s498
        %s500 = sand.u32 %s236, 1
        %s501 = smul.addr %s500, 8
        %s502 = scalar_lea.vmem [#allocation14], %s501
        %p503 = pneg %p277
        %p504 = pneg %p274
        %s505 = sand.u32 %s264, 1
        %s506 = scalar_lea.sflag [#allocation16], %s505
        %s507 = sand.u32 %s264, 1
        %s508 = smul.addr %s507, 8
        %s509 = scalar_lea.vmem [#allocation15], %s508
        %s510 = smul.u32 2, %s39
        %s511 = ssub.s32 %s39, 1
        %p512 = scmp.gt.s32.totalorder %s511, 0
        %s513 = scalar_select %p512, %s511, 0
        %s514 = smul.u32 2, %s513
        %s515 = sadd.s32 %s39, 1
        %p516 = scmp.lt.s32.totalorder %s515, 1
        %s517 = scalar_select %p516, %s515, 1
        %s518 = smul.u32 2, %s517
        %s519 = smul.u32 2, %s39
        %v521 = vld [vmem:[#allocation8] sm:$0x1]
        %v522 = vld [vmem:[#allocation10] sm:$0x1]
        %v523 = vld [vmem:[%s428] sm:$0xf]
        %v524 = vld [vmem:[%s428 + $0x4] sm:$0xf]
        %v525 = vunpack.c.l.bf16 %v523
        %v526 = vunpack.c.l.bf16 %v524
        %v528 = vlaneseq
        %v529 = vshrl.u32 %v528, 7
        %v530 = vsub.s32 0, %v529
        %v531 = vrot.slane %v521, %v530
        %v533 = vmul.f32 %v525, %v531
        %v534 = vmul.f32 %v526, %v531
        %v536 = vlaneseq
        %v537 = vshrl.u32 %v536, 7
        %v538 = vsub.s32 0, %v537
        %v539 = vrot.slane %v522, %v538
        %v541 = vadd.f32 %v533, %v539
        %v542 = vadd.f32 %v534, %v539
        %v543 = vmax.f32 %v541, 0.0
        %v544 = vmax.f32 %v542, 0.0
        %v545 = vpack.c.bf16 %v544, %v543
        %p546 = scmp.gt.s32.totalorder %s39, 0
        %v547 = vld [vmem:[%s437 + $0x4] sm:$0x8]
        %v548 = vunpack.c.l.bf16 %v547
        %v549 = vmul.f32 %v548, %v531
        %v550 = vadd.f32 %v549, %v539
        %v551 = vmax.f32 %v550, 0.0
        %s552 = scalar_select %p546, 1, 0
        %v553 = vstv %s552
        %vm554 = vcmp.eq.s32.totalorder %v553, 1
        %v555 = vsel %vm554, %v551, 0.0
        %v556 = vpack.c.bf16 %v555, %v555
        %p557 = scmp.lt.s32.totalorder %s39, 1
        %v558 = vld [vmem:[%s446] sm:$0x1]
        %v559 = vunpack.c.l.bf16 %v558
        %v560 = vmul.f32 %v559, %v521
        %v561 = vadd.f32 %v560, %v522
        %v562 = vmax.f32 %v561, 0.0
        %s563 = scalar_select %p557, 1, 0
        %v564 = vstv %s563
        %vm565 = vcmp.eq.s32.totalorder %v564, 1
        %v566 = vsel %vm565, %v562, 0.0
        %v567 = vpack.c.bf16 %v566, %v566
        %v569 = vshrl.u32 %v556, 16
        %v571 = vrot.slane %v569, 3
        %v574 = vshrl.u32 %v545, 16
        %v576 = vrot.slane %v574, 7
        %v577 = vshll.u32 %v545, 16
        %v579 = vor.u32 %v576, %v577
        %vm581 = vcmask 1040384
        %vm582 = vsmask.f32 256
        %vm583 = vmand %vm581, %vm582
        %v584 = vsel %vm583, %v571, %v579
        %v585 = vrot.slane %v577, 1
        %v586 = vor.u32 %v574, %v585
        %v589 = vshll.u32 %v567, 16
        %v591 = vrot.slane %v589, 1
        %vm593 = vcmask 1047552
        %vm594 = vsmask.f32 7424
        %vm595 = vmand %vm593, %vm594
        %v596 = vsel %vm595, %v586, %v591
        %v597 = vld [vmem:[#allocation11] sm:$0xf]
        %v598 = vld [vmem:[#allocation11 + $0x4] sm:$0xf]
        %v599 = vld [vmem:[#allocation11 + $0x8] sm:$0xf]
        %v600 = vld [vmem:[#allocation11 + $0xc] sm:$0xf]
        %v601 = vld [vmem:[#allocation11 + $0x10] sm:$0xf]
        %v602 = vld [vmem:[#allocation11 + $0x14] sm:$0xf]
        %v603 = vld [vmem:[#allocation11 + $0x18] sm:$0xf]
        %v604 = vld [vmem:[#allocation11 + $0x1c] sm:$0xf]
        %v605 = vld [vmem:[#allocation11 + $0x20] sm:$0xf]
        %v606 = vld [vmem:[#allocation11 + $0x24] sm:$0xf]
        %v607 = vld [vmem:[#allocation11 + $0x28] sm:$0xf]
        %v608 = vld [vmem:[#allocation11 + $0x2c] sm:$0xf]
        %v609 = vld [vmem:[#allocation11 + $0x30] sm:$0xf]
        %v610 = vld [vmem:[#allocation11 + $0x34] sm:$0xf]
        %v611 = vld [vmem:[#allocation11 + $0x38] sm:$0xf]
        %v612 = vld [vmem:[#allocation11 + $0x3c] sm:$0xf]
        %v613 = vld [vmem:[#allocation11 + $0x40] sm:$0xf]
        %v614 = vld [vmem:[#allocation11 + $0x44] sm:$0xf]
        %v615 = vld [vmem:[#allocation11 + $0x48] sm:$0xf]
        %v616 = vld [vmem:[#allocation11 + $0x4c] sm:$0xf]
        %v617 = vld [vmem:[#allocation11 + $0x50] sm:$0xf]
        %v618 = vld [vmem:[#allocation11 + $0x54] sm:$0xf]
        %v619 = vld [vmem:[#allocation11 + $0x58] sm:$0xf]
        %v620 = vld [vmem:[#allocation11 + $0x5c] sm:$0xf]
        %v621 = vld [vmem:[#allocation11 + $0x60] sm:$0xf]
        %v622 = vld [vmem:[#allocation11 + $0x64] sm:$0xf]
        %v623 = vld [vmem:[#allocation11 + $0x68] sm:$0xf]
        %v624 = vld [vmem:[#allocation11 + $0x6c] sm:$0xf]
        %v625 = vld [vmem:[#allocation11 + $0x70] sm:$0xf]
        %v626 = vld [vmem:[#allocation11 + $0x74] sm:$0xf]
        %v627 = vld [vmem:[#allocation11 + $0x78] sm:$0xf]
        %v628 = vld [vmem:[#allocation11 + $0x7c] sm:$0xf]
        %v629 = vld [vmem:[#allocation11 + $0x80] sm:$0xf]
        %v630 = vld [vmem:[#allocation11 + $0x84] sm:$0xf]
        %v631 = vld [vmem:[#allocation11 + $0x88] sm:$0xf]
        %v632 = vld [vmem:[#allocation11 + $0x8c] sm:$0xf]
        %v633 = vld [vmem:[#allocation11 + $0x90] sm:$0xf]
        %v634 = vld [vmem:[#allocation11 + $0x94] sm:$0xf]
        %v635 = vld [vmem:[#allocation11 + $0x98] sm:$0xf]
        %v636 = vld [vmem:[#allocation11 + $0x9c] sm:$0xf]
        %v637 = vld [vmem:[#allocation11 + $0xa0] sm:$0xf]
        %v638 = vld [vmem:[#allocation11 + $0xa4] sm:$0xf]
        %v639 = vld [vmem:[#allocation11 + $0xa8] sm:$0xf]
        %v640 = vld [vmem:[#allocation11 + $0xac] sm:$0xf]
        %v641 = vld [vmem:[#allocation11 + $0xb0] sm:$0xf]
        %v642 = vld [vmem:[#allocation11 + $0xb4] sm:$0xf]
        %v643 = vld [vmem:[#allocation11 + $0xb8] sm:$0xf]
        %v644 = vld [vmem:[#allocation11 + $0xbc] sm:$0xf]
        %v645 = vld [vmem:[#allocation13] sm:$0x1]
        %v647 = vlaneseq
        %v648 = vshrl.u32 %v647, 7
        %v649 = vsub.s32 0, %v648
        %v650 = vrot.slane %v645, %v649
        %v700 = vunpack.c.l.b16 %v597
        %v701 = vunpack.c.l.b16 %v598
        %v702 = vunpack.c.l.b16 %v599
        %v703 = vunpack.c.l.b16 %v600
        %v704 = vunpack.c.l.b16 %v601
        %v705 = vunpack.c.l.b16 %v602
        %v706 = vunpack.c.l.b16 %v603
        %v707 = vunpack.c.l.b16 %v604
        %v708 = vunpack.c.l.b16 %v605
        %v709 = vunpack.c.l.b16 %v606
        %v710 = vunpack.c.l.b16 %v607
        %v711 = vunpack.c.l.b16 %v608
        %v712 = vunpack.c.l.b16 %v609
        %v713 = vunpack.c.l.b16 %v610
        %v714 = vunpack.c.l.b16 %v611
        %v715 = vunpack.c.l.b16 %v612
        %v716 = vunpack.c.l.b16 %v613
        %v717 = vunpack.c.l.b16 %v614
        %v718 = vunpack.c.l.b16 %v615
        %v719 = vunpack.c.l.b16 %v616
        %v720 = vunpack.c.l.b16 %v617
        %v721 = vunpack.c.l.b16 %v618
        %v722 = vunpack.c.l.b16 %v619
        %v723 = vunpack.c.l.b16 %v620
        %v724 = vunpack.c.l.b16 %v621
        %v725 = vunpack.c.l.b16 %v622
        %v726 = vunpack.c.l.b16 %v623
        %v727 = vunpack.c.l.b16 %v624
        %v728 = vunpack.c.l.b16 %v625
        %v729 = vunpack.c.l.b16 %v626
        %v730 = vunpack.c.l.b16 %v627
        %v731 = vunpack.c.l.b16 %v628
        %v732 = vunpack.c.l.b16 %v629
        %v733 = vunpack.c.l.b16 %v630
        %v734 = vunpack.c.l.b16 %v631
        %v735 = vunpack.c.l.b16 %v632
        %v736 = vunpack.c.l.b16 %v633
        %v737 = vunpack.c.l.b16 %v634
        %v738 = vunpack.c.l.b16 %v635
        %v739 = vunpack.c.l.b16 %v636
        %v740 = vunpack.c.l.b16 %v637
        %v741 = vunpack.c.l.b16 %v638
        %v742 = vunpack.c.l.b16 %v639
        %v743 = vunpack.c.l.b16 %v640
        %v744 = vunpack.c.l.b16 %v641
        %v745 = vunpack.c.l.b16 %v642
        %v746 = vunpack.c.l.b16 %v643
        %v747 = vunpack.c.l.b16 %v644
        %v748 = vpack.c.b16 %v701, %v700
        %v749 = vpack.c.b16 %v703, %v702
        %v750 = vpack.c.b16 %v705, %v704
        %v751 = vpack.c.b16 %v707, %v706
        %v752 = vpack.c.b16 %v709, %v708
        %v753 = vpack.c.b16 %v711, %v710
        %v754 = vpack.c.b16 %v713, %v712
        %v755 = vpack.c.b16 %v715, %v714
        %v756 = vpack.c.b16 %v717, %v716
        %v757 = vpack.c.b16 %v719, %v718
        %v758 = vpack.c.b16 %v721, %v720
        %v759 = vpack.c.b16 %v723, %v722
        %v760 = vpack.c.b16 %v725, %v724
        %v761 = vpack.c.b16 %v727, %v726
        %v762 = vpack.c.b16 %v729, %v728
        %v763 = vpack.c.b16 %v731, %v730
        %v764 = vpack.c.b16 %v733, %v732
        %v765 = vpack.c.b16 %v735, %v734
        %v766 = vpack.c.b16 %v737, %v736
        %v767 = vpack.c.b16 %v739, %v738
        %v768 = vpack.c.b16 %v741, %v740
        %v769 = vpack.c.b16 %v743, %v742
        %v770 = vpack.c.b16 %v745, %v744
        %v771 = vpack.c.b16 %v747, %v746
        %796 = vmatprep.subr.bf16.mxu0 0
        %797 = vmatpush1.bf16.msra.mxu0 %v748
        %798 = vmatprep.subr.bf16.mxu0 0
        %799 = vmatpush1.bf16.msra.mxu0 %v749
        %800 = vmatprep.subr.bf16.mxu0 0
        %801 = vmatpush1.bf16.msra.mxu0 %v750
        %802 = vmatprep.subr.bf16.mxu0 0
        %803 = vmatpush1.bf16.msra.mxu0 %v751
        %804 = vmatprep.subr.bf16.mxu0 0
        %805 = vmatpush1.bf16.msra.mxu0 %v752
        %806 = vmatprep.subr.bf16.mxu0 0
        %807 = vmatpush1.bf16.msra.mxu0 %v753
        %808 = vmatprep.subr.bf16.mxu0 0
        %809 = vmatpush1.bf16.msra.mxu0 %v754
        %810 = vmatprep.subr.bf16.mxu0 0
        %811 = vmatpush1.bf16.msra.mxu0 %v755
        %812 = vmatprep.subr.bf16.mxu0 0
        %813 = vmatpush1.bf16.msra.mxu0 %v756
        %814 = vmatprep.subr.bf16.mxu0 0
        %815 = vmatpush1.bf16.msra.mxu0 %v757
        %816 = vmatprep.subr.bf16.mxu0 0
        %817 = vmatpush1.bf16.msra.mxu0 %v758
        %818 = vmatprep.subr.bf16.mxu0 0
        %819 = vmatpush1.bf16.msra.mxu0 %v759
        %820 = vmatprep.subr.bf16.mxu0 0
        %821 = vmatpush1.bf16.msra.mxu0 %v760
        %822 = vmatprep.subr.bf16.mxu0 0
        %823 = vmatpush1.bf16.msra.mxu0 %v761
        %824 = vmatprep.subr.bf16.mxu0 0
        %825 = vmatpush1.bf16.msra.mxu0 %v762
        %826 = vmatprep.subr.bf16.mxu0 0
        %827 = vmatpush1.bf16.msra.mxu0 %v763
        %828 = vmatprep.mubr.bf16.mxu0 %v545
        %829 = vmatmul.mubr.bf16.gmra.mrb[0].mxu0 %v584
        %v830 = vpop.f32.mrb[0].mxu0
        %v831 = vadd.f32 %v650, %v830
        %v832 = vpop.f32.mrb[0].mxu0
        %v833 = vpop.f32.mrb[0].mxu0
        %v834 = vadd.f32 %v650, %v833
        %v835 = vpop.f32.mrb[0].mxu0
        %836 = vdwg.mxu0
        %837 = vmatprep.subr.bf16.mxu0 0
        %838 = vmatpush1.bf16.msra.mxu0 %v764
        %839 = vmatprep.subr.bf16.mxu0 0
        %840 = vmatpush1.bf16.msra.mxu0 %v765
        %841 = vmatprep.subr.bf16.mxu0 0
        %842 = vmatpush1.bf16.msra.mxu0 %v766
        %843 = vmatprep.subr.bf16.mxu0 0
        %844 = vmatpush1.bf16.msra.mxu0 %v767
        %845 = vmatprep.subr.bf16.mxu0 0
        %846 = vmatpush1.bf16.msra.mxu0 %v768
        %847 = vmatprep.subr.bf16.mxu0 0
        %848 = vmatpush1.bf16.msra.mxu0 %v769
        %849 = vmatprep.subr.bf16.mxu0 0
        %850 = vmatpush1.bf16.msra.mxu0 %v770
        %851 = vmatprep.subr.bf16.mxu0 0
        %852 = vmatpush1.bf16.msra.mxu0 %v771
        %853 = vmatprep.subr.bf16.mxu0 0
        %854 = vmatpush1.bf16.msra.mxu0 0
        %855 = vmatprep.subr.bf16.mxu0 0
        %856 = vmatpush1.bf16.msra.mxu0 0
        %857 = vmatprep.subr.bf16.mxu0 0
        %858 = vmatpush1.bf16.msra.mxu0 0
        %859 = vmatprep.subr.bf16.mxu0 0
        %860 = vmatpush1.bf16.msra.mxu0 0
        %861 = vmatprep.subr.bf16.mxu0 0
        %862 = vmatpush1.bf16.msra.mxu0 0
        %863 = vmatprep.subr.bf16.mxu0 0
        %864 = vmatpush1.bf16.msra.mxu0 0
        %865 = vmatprep.subr.bf16.mxu0 0
        %866 = vmatpush1.bf16.msra.mxu0 0
        %867 = vmatprep.subr.bf16.mxu0 0
        %868 = vmatpush1.bf16.msra.mxu0 0
        %869 = vmatprep.mubr.bf16.mxu0 0
        %870 = vmatmul.mubr.bf16.gmra.mrb[0].mxu0 %v596
        %v871 = vpop.f32.mrb[0].mxu0
        %v872 = vadd.f32 %v831, %v871
        %v873 = vpop.f32.mrb[0].mxu0
        %v874 = vpop.f32.mrb[0].mxu0
        %v875 = vadd.f32 %v834, %v874
        %v876 = vpop.f32.mrb[0].mxu0
        %877 = vdwg.mxu0
        %v878 = vpack.c.bf16 %v875, %v872
        %v880 = vunpack.c.l.b16 %v878
        %v881 = vunpack.c.h.b16 %v878
        %v882 = vpack.c.b16 %v880, %v880
        %v883 = vpack.c.b16 %v881, %v881
        %886 = vst [vmem:[%s502] sm:$0xf] %v882
        %887 = vst [vmem:[%s502 + $0x4] sm:$0xf] %v883
        %v888 = vadd.f32 %v872, %v875
        %v889 = vrot.slane %v888, 4
        %v890 = vadd.f32 %v888, %v889
        %v891 = vrot.slane %v890, 2
        %v892 = vadd.f32 %v890, %v891
        %v893 = vrot.slane %v892, 1
        %v894 = vadd.f32 %v892, %v893
        %v895 = vmul.f32 %v872, %v872
        %v896 = vmul.f32 %v875, %v875
        %v897 = vadd.f32 %v895, %v896
        %v898 = vrot.slane %v897, 4
        %v899 = vadd.f32 %v897, %v898
        %v900 = vrot.slane %v899, 2
        %v901 = vadd.f32 %v899, %v900
        %v902 = vrot.slane %v901, 1
        %v903 = vadd.f32 %v901, %v902
        %vm904 = vcmask 1040384
        %v905 = vsel %vm904, %v894, %v903
        %vm906 = vcmask 1041408
        %v907 = vsel %vm906, %v905, 0.0
        %908 = vst [vmem:[%s509] sm:$0xff] %v907
        %s909 = sand.u32 %s236, 1
        %s910 = scalar_lea.sflag [#allocation4], %s909
        %s911 = sand.u32 %s236, 1
        %s912 = smul.addr %s911, 8
        %s913 = scalar_lea.vmem [#allocation14], %s912
        %s914 = sand.u32 %s264, 1
        %s915 = scalar_lea.sflag [#allocation16], %s914
        %s916 = sand.u32 %s264, 1
        %s917 = smul.addr %s916, 8
        %s918 = scalar_lea.vmem [#allocation15], %s917
        // Predicated region
        $region77: #{residual_forward.4} parent=47 // pred_check
          %p919 = pneg %p246
        $region78: #{residual_forward.4} parent=47 // pred_check_branch
          %921 = sbr.rel (%p919) target = $region80
        $region79: #{residual_forward.4} parent=47 // pred_region
          %s922 = smul.u32 2, %s39
          %s924 = ssub.s32 128, 128
          %925 = vsyncadd %s910, %s924
          %s926 = smul.addr %s38, 4
          %s927 = sadd.s32 %s922, %s926
          %s928 = smul.addr %s927, 64
          %s929 = scalar_lea.hbm %s7, %s928
          %s930 = sshll.u32 %s913, 4
          %s931 = int_to_ptr.vmem [resolvable:$true] %s930
          %936 = dma.vmem_to_hbm [thread:$0]  %s931, 128, %s929, %s910, 64, 64, 4
        $region80: #{residual_forward.4} parent=47 // pred_fallthru
          _
        // Predicated region
        $region81: #{residual_forward.4} parent=47 // pred_check
          %p937 = pneg %p274
        $region82: #{residual_forward.4} parent=47 // pred_check_branch
          %939 = sbr.rel (%p937) target = $region84
        $region83: #{residual_forward.4} parent=47 // pred_region
          %s941 = ssub.s32 128, 128
          %942 = vsyncadd %s915, %s941
          %s943 = smul.addr %s38, 2
          %s944 = sadd.s32 %s39, %s943
          %s945 = smul.addr %s944, 128
          %s946 = scalar_lea.hbm %s8, %s945
          %s948 = sshll.u32 %s918, 4
          %s949 = int_to_ptr.vmem [resolvable:$true] %s948
          %951 = dma.vmem_to_hbm [thread:$0]  %s949, 128, %s946, %s915
        $region84: #{residual_forward.4} parent=47 // pred_fallthru
          _
      $region48: #{residual_forward.4} parent=5 // pred_fallthru
        _
      %p952 = scmp.le.s32.totalorder 2, %s29
      // Predicated region
      $region85: #{residual_forward.4} parent=5 // pred_check
        %p953 = pneg %p952
      $region86: #{residual_forward.4} parent=5 // pred_check_branch
        %955 = sbr.rel (%p953) target = $region88
      $region87: #{residual_forward.4} parent=5 // pred_region
        %s956 = ssub.s32 %s29, 2
        // Predicated region
        $region89: #{residual_forward.4} parent=87 // pred_check
          %p957 = pneg %p252
        $region90: #{residual_forward.4} parent=87 // pred_check_branch
          %959 = sbr.rel (%p957) target = $region92
        $region91: #{residual_forward.4} parent=87 // pred_region
          %s960 = sand.u32 %s237, 1
          %s961 = scalar_lea.sflag [#allocation4], %s960
          %s962 = sand.u32 %s237, 1
          %s963 = smul.addr %s962, 8
          %s964 = scalar_lea.vmem [#allocation14], %s963
          %965 = dma.done %s961, 128
        $region92: #{residual_forward.4} parent=87 // pred_fallthru
          _
        // Predicated region
        $region93: #{residual_forward.4} parent=87 // pred_check
          %p966 = pneg %p280
        $region94: #{residual_forward.4} parent=87 // pred_check_branch
          %968 = sbr.rel (%p966) target = $region96
        $region95: #{residual_forward.4} parent=87 // pred_region
          %s969 = sand.u32 %s265, 1
          %s970 = scalar_lea.sflag [#allocation16], %s969
          %s971 = sand.u32 %s265, 1
          %s972 = smul.addr %s971, 8
          %s973 = scalar_lea.vmem [#allocation15], %s972
          %974 = dma.done %s970, 128
        $region96: #{residual_forward.4} parent=87 // pred_fallthru
          _
      $region88: #{residual_forward.4} parent=5 // pred_fallthru
        _
    $region6: #{residual_forward.4} parent=1 // loop_footer
      %s33 = sadd.s32 1, %s29
    $region7: #{residual_forward.4} parent=1 // loop_footer_branch
      %28 = sbr.rel target = $region3
    $region8: #{residual_forward.4} parent=1 // loop_exit
      _
    %975 = vsyncpa [#allocation3], 1
    %s976 = scalar_lea.sflag [#allocation3], 1
    %977 = vsyncpa %s976, 1
    %978 = vsyncpa [#allocation6], 1
    %s979 = scalar_lea.sflag [#allocation6], 1
    %980 = vsyncpa %s979, 1
    %981 = vsyncpa [#allocation9], 1
    %982 = vsyncpa [#allocation12], 1
    %983 = vsyncpa [#allocation4], 1
    %s984 = scalar_lea.sflag [#allocation4], 1
    %985 = vsyncpa %s984, 1
    %986 = vsyncpa [#allocation16], 1
    %s987 = scalar_lea.sflag [#allocation16], 1
    %988 = vsyncpa %s987, 1

// kernel: residual_forward.3
$region0: #{residual_forward.3}
  #allocation0 [shape = 'u32[]', space=smem, size = 0x4, offset = 0x4, fixed_abs, tag = 'smem constant byte address 0x4 - core index']
  #allocation1 [shape = 'u32[144,128]{1,0:T(1,128)}', space=vmem, size = 0x12000, scoped, tag = 'internal scratch']
  %s0 = inlined_call_operand.hbm [shape: bf16[2,32,128], index: 0, kind: input, shape index: {}, may-alias: {0,1,2}]
  %s1 = inlined_call_operand.hbm [shape: bf16[2,32,128], index: 1, kind: input, shape index: {}, may-alias: {0,1,2}]
  %s2 = inlined_call_operand.hbm [shape: bf16[2,32,128], index: 2, kind: input, shape index: {}, may-alias: {0,1,2}]
  %s3 = inlined_call_operand.hbm [shape: bf16[384,128], index: 3, kind: input, shape index: {}]
  %s4 = inlined_call_operand.hbm [shape: f32[1,128], index: 4, kind: input, shape index: {}]
  %s5 = inlined_call_operand.hbm [shape: bf16[128,128], index: 5, kind: input, shape index: {}]
  %s6 = inlined_call_operand.hbm [shape: f32[1,128], index: 6, kind: input, shape index: {}]
  %s7 = inlined_call_operand.hbm [shape: bf16[2,32,128], index: 7, kind: output, shape index: {0}]
  %s8 = inlined_call_operand.hbm [shape: bf16[2,32,128], index: 8, kind: output, shape index: {1}]
  %s9 = inlined_call_operand.hbm [shape: f32[2,16,128], index: 9, kind: output, shape index: {2}]
  %10 = xla_tuple %s7, %s8, %s9
  %s11 = sld [smem:[#allocation0]]
  $region105: #{residual_forward.3} parent=0
    _
  %s13 = ssub.s32 1, %s11
  %s14 = scalar_select 0, %s13, %s11
  $region1: #{residual_forward.3} parent=0
    #allocation2 [shape = 'u8[8192]{0}', space=vmem, size = 0x2000, scoped, tag = 'input window, operand 0']
    #allocation3 [shape = 's32[2]{0}', space=sflag, size = 0x8, scoped, tag = 'scoped memory for residual_forward.3']
    #allocation4 [shape = 's32[2]{0}', space=sflag, size = 0x8, scoped, tag = 'scoped memory for residual_forward.3']
    #allocation5 [shape = 'u8[8192]{0}', space=vmem, size = 0x2000, scoped, tag = 'input window, operand 1']
    #allocation6 [shape = 's32[2]{0}', space=sflag, size = 0x8, scoped, tag = 'scoped memory for residual_forward.3']
    #allocation7 [shape = 'u8[8192]{0}', space=vmem, size = 0x2000, scoped, tag = 'input window, operand 2']
    #allocation8 [shape = 'u8[98304]{0}', space=vmem, size = 0x18000, scoped, tag = 'input window, operand 3, single buffered']
    #allocation9 [shape = 's32[1]{0}', space=sflag, size = 0x4, scoped, tag = 'scoped memory for residual_forward.3']
    #allocation10 [shape = 'u8[512]{0}', space=vmem, size = 0x400, scoped, tag = 'input window, operand 4, single buffered']
    #allocation11 [shape = 'u8[32768]{0}', space=vmem, size = 0x8000, scoped, tag = 'input window, operand 5, single buffered']
    #allocation12 [shape = 's32[1]{0}', space=sflag, size = 0x4, scoped, tag = 'scoped memory for residual_forward.3']
    #allocation13 [shape = 'u8[512]{0}', space=vmem, size = 0x400, scoped, tag = 'input window, operand 6, single buffered']
    #allocation14 [shape = 'u8[8192]{0}', space=vmem, size = 0x2000, scoped, tag = 'output window, operand 0']
    #allocation15 [shape = 'u8[8192]{0}', space=vmem, size = 0x2000, scoped, tag = 'output window, operand 1']
    #allocation16 [shape = 's32[2]{0}', space=sflag, size = 0x8, scoped, tag = 'scoped memory for residual_forward.3']
    #allocation17 [shape = 'u8[8192]{0}', space=vmem, size = 0x2000, scoped, tag = 'output window, operand 2']
    %15 = vsyncpa [#allocation3], 0
    %s16 = scalar_lea.sflag [#allocation3], 1
    %17 = vsyncpa %s16, 0
    %18 = vsyncpa [#allocation6], 0
    %s19 = scalar_lea.sflag [#allocation6], 1
    %20 = vsyncpa %s19, 0
    %21 = vsyncpa [#allocation9], 0
    %22 = vsyncpa [#allocation12], 0
    %23 = vsyncpa [#allocation4], 0
    %s24 = scalar_lea.sflag [#allocation4], 1
    %25 = vsyncpa %s24, 0
    %26 = vsyncpa [#allocation16], 0
    %s27 = scalar_lea.sflag [#allocation16], 1
    %28 = vsyncpa %s27, 0
    loop: start=0, step=1, limit=6
    $region2: #{residual_forward.3} parent=1 // loop_pre_header
      _
    $region3: #{residual_forward.3} parent=1 // loop_header
      %s30 = sphi 0, %s34
      %p31 = scmp.ge.s32.totalorder %s30, 6
      %s37 = sphi 0, %s49
      %s38 = sphi 0, %s45
      %s39 = sphi 0, %s37
      %s40 = sphi 0, %s38
      %s41 = sphi 0, %s39
      %s42 = sphi 0, %s40
      %s54 = sphi 0, %s56
      %s57 = sphi 0, %s54
      %s58 = sphi 0, %s57
      %s74 = sphi 0, %s58
      %s88 = sphi 0, %s90
      %s91 = sphi 0, %s88
      %s92 = sphi 0, %s91
      %s108 = sphi 0, %s92
      %s122 = sphi 0, %s124
      %s125 = sphi 0, %s122
      %s126 = sphi 0, %s125
      %s142 = sphi 0, %s126
      %s146 = sphi 0, %s146
      %s148 = sphi 0, %s146
      %s149 = sphi 0, %s148
      %s163 = sphi 0, %s149
      %s167 = sphi 0, %s167
      %s169 = sphi 0, %s167
      %s170 = sphi 0, %s169
      %s184 = sphi 0, %s170
      %s188 = sphi 0, %s188
      %s190 = sphi 0, %s188
      %s191 = sphi 0, %s190
      %s205 = sphi 0, %s191
      %s209 = sphi 0, %s209
      %s211 = sphi 0, %s209
      %s212 = sphi 0, %s211
      %s226 = sphi 0, %s212
      %s234 = sphi 0, %s236
      %s237 = sphi 0, %s234
      %s238 = sphi 0, %s237
      %s254 = sphi 0, %s238
      %s262 = sphi 0, %s264
      %s265 = sphi 0, %s262
      %s266 = sphi 0, %s265
      %s282 = sphi 0, %s266
      %s290 = sphi 0, %s292
      %s293 = sphi 0, %s290
      %s294 = sphi 0, %s293
      %s310 = sphi 0, %s294
    $region4: #{residual_forward.3} parent=1 // loop_header_branch
      %33 = sbr.rel (%p31) target = $region8
    $region5: #{residual_forward.3} parent=1 // loop_body
      %s35 = ssub.s32 %s30, 1
      %s36 = ssub.s32 %s30, 2
      %s43 = sadd.s32 1, %s38
      %p44 = scmp.ge.s32.totalorder %s43, 2
      %s45 = scalar_select %p44, 0, %s43
      %s46 = sadd.s32 1, %s37
      %s47 = scalar_select %p44, %s46, %s37
      %p48 = scmp.ge.s32.totalorder %s47, 2
      %s49 = scalar_select %p48, 0, %s47
      %s50 = ssub.s32 %s37, %s49
      %s51 = ssub.s32 %s38, %s45
      %s52 = sor.u32 %s50, %s51
      %p53 = scmp.eq.s32.totalorder %s52, 0
      %s55 = sadd.s32 %s54, 1
      %s56 = scalar_select %p53, %s54, %s55
      %p59 = pneg %p53
      %p60 = scmp.eq.s32.totalorder %s30, 3
      %p61 = por %p59, %p60
      %p62 = scmp.ne.s32.totalorder %s54, %s57
      %p63 = scmp.eq.s32.totalorder %s30, 0
      %p64 = por %p62, %p63
      %p65 = scmp.ne.s32.totalorder %s54, %s57
      %p66 = scmp.eq.s32.totalorder %s35, 3
      %p67 = por %p65, %p66
      %p68 = scmp.ne.s32.totalorder %s57, %s58
      %p69 = scmp.eq.s32.totalorder %s35, 0
      %p70 = por %p68, %p69
      %p71 = scmp.ne.s32.totalorder %s57, %s58
      %p72 = scmp.eq.s32.totalorder %s36, 3
      %p73 = por %p71, %p72
      %p75 = scmp.ne.s32.totalorder %s58, %s74
      %p76 = scmp.eq.s32.totalorder %s36, 0
      %p77 = por %p75, %p76
      %s78 = ssub.s32 %s38, 1
      %p79 = scmp.gt.s32.totalorder %s78, 0
      %s80 = scalar_select %p79, %s78, 0
      %s81 = ssub.s32 %s45, 1
      %p82 = scmp.gt.s32.totalorder %s81, 0
      %s83 = scalar_select %p82, %s81, 0
      %s84 = ssub.s32 %s37, %s49
      %s85 = ssub.s32 %s80, %s83
      %s86 = sor.u32 %s84, %s85
      %p87 = scmp.eq.s32.totalorder %s86, 0
      %s89 = sadd.s32 %s88, 1
      %s90 = scalar_select %p87, %s88, %s89
      %p93 = pneg %p87
      %p94 = scmp.eq.s32.totalorder %s30, 3
      %p95 = por %p93, %p94
      %p96 = scmp.ne.s32.totalorder %s88, %s91
      %p97 = scmp.eq.s32.totalorder %s30, 0
      %p98 = por %p96, %p97
      %p99 = scmp.ne.s32.totalorder %s88, %s91
      %p100 = scmp.eq.s32.totalorder %s35, 3
      %p101 = por %p99, %p100
      %p102 = scmp.ne.s32.totalorder %s91, %s92
      %p103 = scmp.eq.s32.totalorder %s35, 0
      %p104 = por %p102, %p103
      %p105 = scmp.ne.s32.totalorder %s91, %s92
      %p106 = scmp.eq.s32.totalorder %s36, 3
      %p107 = por %p105, %p106
      %p109 = scmp.ne.s32.totalorder %s92, %s108
      %p110 = scmp.eq.s32.totalorder %s36, 0
      %p111 = por %p109, %p110
      %s112 = sadd.s32 %s38, 1
      %p113 = scmp.lt.s32.totalorder %s112, 1
      %s114 = scalar_select %p113, %s112, 1
      %s115 = sadd.s32 %s45, 1
      %p116 = scmp.lt.s32.totalorder %s115, 1
      %s117 = scalar_select %p116, %s115, 1
      %s118 = ssub.s32 %s37, %s49
      %s119 = ssub.s32 %s114, %s117
      %s120 = sor.u32 %s118, %s119
      %p121 = scmp.eq.s32.totalorder %s120, 0
      %s123 = sadd.s32 %s122, 1
      %s124 = scalar_select %p121, %s122, %s123
      %p127 = pneg %p121
      %p128 = scmp.eq.s32.totalorder %s30, 3
      %p129 = por %p127, %p128
      %p130 = scmp.ne.s32.totalorder %s122, %s125
      %p131 = scmp.eq.s32.totalorder %s30, 0
      %p132 = por %p130, %p131
      %p133 = scmp.ne.s32.totalorder %s122, %s125
      %p134 = scmp.eq.s32.totalorder %s35, 3
      %p135 = por %p133, %p134
      %p136 = scmp.ne.s32.totalorder %s125, %s126
      %p137 = scmp.eq.s32.totalorder %s35, 0
      %p138 = por %p136, %p137
      %p139 = scmp.ne.s32.totalorder %s125, %s126
      %p140 = scmp.eq.s32.totalorder %s36, 3
      %p141 = por %p139, %p140
      %p143 = scmp.ne.s32.totalorder %s126, %s142
      %p144 = scmp.eq.s32.totalorder %s36, 0
      %p145 = por %p143, %p144
      %s147 = sadd.s32 %s146, 1
      %p150 = scmp.eq.s32.totalorder %s30, 3
      %p151 = scmp.ne.s32.totalorder %s146, %s148
      %p152 = scmp.eq.s32.totalorder %s30, 0
      %p153 = por %p151, %p152
      %p154 = scmp.ne.s32.totalorder %s146, %s148
      %p155 = scmp.eq.s32.totalorder %s35, 3
      %p156 = por %p154, %p155
      %p157 = scmp.ne.s32.totalorder %s148, %s149
      %p158 = scmp.eq.s32.totalorder %s35, 0
      %p159 = por %p157, %p158
      %p160 = scmp.ne.s32.totalorder %s148, %s149
      %p161 = scmp.eq.s32.totalorder %s36, 3
      %p162 = por %p160, %p161
      %p164 = scmp.ne.s32.totalorder %s149, %s163
      %p165 = scmp.eq.s32.totalorder %s36, 0
      %p166 = por %p164, %p165
      %s168 = sadd.s32 %s167, 1
      %p171 = scmp.eq.s32.totalorder %s30, 3
      %p172 = scmp.ne.s32.totalorder %s167, %s169
      %p173 = scmp.eq.s32.totalorder %s30, 0
      %p174 = por %p172, %p173
      %p175 = scmp.ne.s32.totalorder %s167, %s169
      %p176 = scmp.eq.s32.totalorder %s35, 3
      %p177 = por %p175, %p176
      %p178 = scmp.ne.s32.totalorder %s169, %s170
      %p179 = scmp.eq.s32.totalorder %s35, 0
      %p180 = por %p178, %p179
      %p181 = scmp.ne.s32.totalorder %s169, %s170
      %p182 = scmp.eq.s32.totalorder %s36, 3
      %p183 = por %p181, %p182
      %p185 = scmp.ne.s32.totalorder %s170, %s184
      %p186 = scmp.eq.s32.totalorder %s36, 0
      %p187 = por %p185, %p186
      %s189 = sadd.s32 %s188, 1
      %p192 = scmp.eq.s32.totalorder %s30, 3
      %p193 = scmp.ne.s32.totalorder %s188, %s190
      %p194 = scmp.eq.s32.totalorder %s30, 0
      %p195 = por %p193, %p194
      %p196 = scmp.ne.s32.totalorder %s188, %s190
      %p197 = scmp.eq.s32.totalorder %s35, 3
      %p198 = por %p196, %p197
      %p199 = scmp.ne.s32.totalorder %s190, %s191
      %p200 = scmp.eq.s32.totalorder %s35, 0
      %p201 = por %p199, %p200
      %p202 = scmp.ne.s32.totalorder %s190, %s191
      %p203 = scmp.eq.s32.totalorder %s36, 3
      %p204 = por %p202, %p203
      %p206 = scmp.ne.s32.totalorder %s191, %s205
      %p207 = scmp.eq.s32.totalorder %s36, 0
      %p208 = por %p206, %p207
      %s210 = sadd.s32 %s209, 1
      %p213 = scmp.eq.s32.totalorder %s30, 3
      %p214 = scmp.ne.s32.totalorder %s209, %s211
      %p215 = scmp.eq.s32.totalorder %s30, 0
      %p216 = por %p214, %p215
      %p217 = scmp.ne.s32.totalorder %s209, %s211
      %p218 = scmp.eq.s32.totalorder %s35, 3
      %p219 = por %p217, %p218
      %p220 = scmp.ne.s32.totalorder %s211, %s212
      %p221 = scmp.eq.s32.totalorder %s35, 0
      %p222 = por %p220, %p221
      %p223 = scmp.ne.s32.totalorder %s211, %s212
      %p224 = scmp.eq.s32.totalorder %s36, 3
      %p225 = por %p223, %p224
      %p227 = scmp.ne.s32.totalorder %s212, %s226
      %p228 = scmp.eq.s32.totalorder %s36, 0
      %p229 = por %p227, %p228
      %s230 = ssub.s32 %s37, %s49
      %s231 = ssub.s32 %s38, %s45
      %s232 = sor.u32 %s230, %s231
      %p233 = scmp.eq.s32.totalorder %s232, 0
      %s235 = sadd.s32 %s234, 1
      %s236 = scalar_select %p233, %s234, %s235
      %p239 = pneg %p233
      %p240 = scmp.eq.s32.totalorder %s30, 3
      %p241 = por %p239, %p240
      %p242 = scmp.ne.s32.totalorder %s234, %s237
      %p243 = scmp.eq.s32.totalorder %s30, 0
      %p244 = por %p242, %p243
      %p245 = scmp.ne.s32.totalorder %s234, %s237
      %p246 = scmp.eq.s32.totalorder %s35, 3
      %p247 = por %p245, %p246
      %p248 = scmp.ne.s32.totalorder %s237, %s238
      %p249 = scmp.eq.s32.totalorder %s35, 0
      %p250 = por %p248, %p249
      %p251 = scmp.ne.s32.totalorder %s237, %s238
      %p252 = scmp.eq.s32.totalorder %s36, 3
      %p253 = por %p251, %p252
      %p255 = scmp.ne.s32.totalorder %s238, %s254
      %p256 = scmp.eq.s32.totalorder %s36, 0
      %p257 = por %p255, %p256
      %s258 = ssub.s32 %s37, %s49
      %s259 = ssub.s32 %s38, %s45
      %s260 = sor.u32 %s258, %s259
      %p261 = scmp.eq.s32.totalorder %s260, 0
      %s263 = sadd.s32 %s262, 1
      %s264 = scalar_select %p261, %s262, %s263
      %p267 = pneg %p261
      %p268 = scmp.eq.s32.totalorder %s30, 3
      %p269 = por %p267, %p268
      %p270 = scmp.ne.s32.totalorder %s262, %s265
      %p271 = scmp.eq.s32.totalorder %s30, 0
      %p272 = por %p270, %p271
      %p273 = scmp.ne.s32.totalorder %s262, %s265
      %p274 = scmp.eq.s32.totalorder %s35, 3
      %p275 = por %p273, %p274
      %p276 = scmp.ne.s32.totalorder %s265, %s266
      %p277 = scmp.eq.s32.totalorder %s35, 0
      %p278 = por %p276, %p277
      %p279 = scmp.ne.s32.totalorder %s265, %s266
      %p280 = scmp.eq.s32.totalorder %s36, 3
      %p281 = por %p279, %p280
      %p283 = scmp.ne.s32.totalorder %s266, %s282
      %p284 = scmp.eq.s32.totalorder %s36, 0
      %p285 = por %p283, %p284
      %s286 = ssub.s32 %s37, %s49
      %s287 = ssub.s32 %s38, %s45
      %s288 = sor.u32 %s286, %s287
      %p289 = scmp.eq.s32.totalorder %s288, 0
      %s291 = sadd.s32 %s290, 1
      %s292 = scalar_select %p289, %s290, %s291
      %p295 = pneg %p289
      %p296 = scmp.eq.s32.totalorder %s30, 3
      %p297 = por %p295, %p296
      %p298 = scmp.ne.s32.totalorder %s290, %s293
      %p299 = scmp.eq.s32.totalorder %s30, 0
      %p300 = por %p298, %p299
      %p301 = scmp.ne.s32.totalorder %s290, %s293
      %p302 = scmp.eq.s32.totalorder %s35, 3
      %p303 = por %p301, %p302
      %p304 = scmp.ne.s32.totalorder %s293, %s294
      %p305 = scmp.eq.s32.totalorder %s35, 0
      %p306 = por %p304, %p305
      %p307 = scmp.ne.s32.totalorder %s293, %s294
      %p308 = scmp.eq.s32.totalorder %s36, 3
      %p309 = por %p307, %p308
      %p311 = scmp.ne.s32.totalorder %s294, %s310
      %p312 = scmp.eq.s32.totalorder %s36, 0
      %p313 = por %p311, %p312
      %p314 = scmp.le.s32.totalorder 1, %s30
      %p315 = scmp.lt.s32.totalorder %s30, 5
      %p316 = pnand %p314, %p315
      %p317 = pneg %p316
      // Predicated region
      $region9: #{residual_forward.3} parent=5 // pred_check
        _
      $region10: #{residual_forward.3} parent=5 // pred_check_branch
        %319 = sbr.rel (%p316) target = $region12
      $region11: #{residual_forward.3} parent=5 // pred_region
        %s320 = ssub.s32 %s30, 1
        // Predicated region
        $region13: #{residual_forward.3} parent=11 // pred_check
          %p321 = pneg %p159
        $region14: #{residual_forward.3} parent=11 // pred_check_branch
          %323 = sbr.rel (%p321) target = $region16
        $region15: #{residual_forward.3} parent=11 // pred_region
          %s325 = ssub.s32 3072, 3072
          %326 = vsyncadd [#allocation9], %s325
          %s327 = sshll.u32 [#allocation8], 4
          %s328 = int_to_ptr.vmem [resolvable:$true] %s327
          %333 = dma.hbm_to_vmem [thread:$0]  %s3, 3072, %s328, [#allocation9], 64, 64, 4
        $region16: #{residual_forward.3} parent=11 // pred_fallthru
          _
        // Predicated region
        $region17: #{residual_forward.3} parent=11 // pred_check
          %p334 = pneg %p180
        $region18: #{residual_forward.3} parent=11 // pred_check_branch
          %336 = sbr.rel (%p334) target = $region20
        $region19: #{residual_forward.3} parent=11 // pred_region
          %s338 = ssub.s32 16, 16
          %339 = vsyncadd [#allocation9], %s338
          %s341 = sshll.u32 [#allocation10], 4
          %s342 = int_to_ptr.vmem [resolvable:$true] %s341
          %344 = dma.hbm_to_vmem [thread:$0]  %s4, 16, %s342, [#allocation9]
        $region20: #{residual_forward.3} parent=11 // pred_fallthru
          _
        // Predicated region
        $region21: #{residual_forward.3} parent=11 // pred_check
          %p345 = pneg %p201
        $region22: #{residual_forward.3} parent=11 // pred_check_branch
          %347 = sbr.rel (%p345) target = $region24
        $region23: #{residual_forward.3} parent=11 // pred_region
          %s349 = ssub.s32 1024, 1024
          %350 = vsyncadd [#allocation12], %s349
          %s351 = sshll.u32 [#allocation11], 4
          %s352 = int_to_ptr.vmem [resolvable:$true] %s351
          %357 = dma.hbm_to_vmem [thread:$0]  %s5, 1024, %s352, [#allocation12], 64, 64, 4
        $region24: #{residual_forward.3} parent=11 // pred_fallthru
          _
        // Predicated region
        $region25: #{residual_forward.3} parent=11 // pred_check
          %p358 = pneg %p222
        $region26: #{residual_forward.3} parent=11 // pred_check_branch
          %360 = sbr.rel (%p358) target = $region28
        $region27: #{residual_forward.3} parent=11 // pred_region
          %s362 = ssub.s32 16, 16
          %363 = vsyncadd [#allocation12], %s362
          %s365 = sshll.u32 [#allocation13], 4
          %s366 = int_to_ptr.vmem [resolvable:$true] %s365
          %368 = dma.hbm_to_vmem [thread:$0]  %s6, 16, %s366, [#allocation12]
        $region28: #{residual_forward.3} parent=11 // pred_fallthru
          _
      $region12: #{residual_forward.3} parent=5 // pred_fallthru
        _
      %p369 = scmp.lt.s32.totalorder %s30, 4
      // Predicated region
      $region29: #{residual_forward.3} parent=5 // pred_check
        %p370 = pneg %p369
      $region30: #{residual_forward.3} parent=5 // pred_check_branch
        %372 = sbr.rel (%p370) target = $region32
      $region31: #{residual_forward.3} parent=5 // pred_region
        // Predicated region
        $region33: #{residual_forward.3} parent=31 // pred_check
          %p373 = pneg %p64
        $region34: #{residual_forward.3} parent=31 // pred_check_branch
          %375 = sbr.rel (%p373) target = $region36
        $region35: #{residual_forward.3} parent=31 // pred_region
          %s376 = sand.u32 %s54, 1
          %s377 = scalar_lea.sflag [#allocation3], %s376
          %s378 = sand.u32 %s54, 1
          %s379 = smul.addr %s378, 8
          %s380 = scalar_lea.vmem [#allocation2], %s379
          %s381 = smul.u32 2, %s38
          %s383 = ssub.s32 128, 128
          %384 = vsyncadd %s377, %s383
          %s385 = smul.addr %s37, 4
          %s386 = sadd.s32 %s381, %s385
          %s387 = smul.addr %s386, 64
          %s388 = scalar_lea.hbm %s0, %s387
          %s389 = sshll.u32 %s380, 4
          %s390 = int_to_ptr.vmem [resolvable:$true] %s389
          %395 = dma.hbm_to_vmem [thread:$0]  %s388, 128, %s390, %s377, 64, 64, 4
        $region36: #{residual_forward.3} parent=31 // pred_fallthru
          _
        // Predicated region
        $region37: #{residual_forward.3} parent=31 // pred_check
          %p396 = pneg %p98
        $region38: #{residual_forward.3} parent=31 // pred_check_branch
          %398 = sbr.rel (%p396) target = $region40
        $region39: #{residual_forward.3} parent=31 // pred_region
          %s399 = sand.u32 %s30, 1
          %s400 = scalar_lea.sflag [#allocation6], %s399
          %s401 = sand.u32 %s88, 1
          %s402 = smul.addr %s401, 8
          %s403 = scalar_lea.vmem [#allocation5], %s402
          %s404 = ssub.s32 %s38, 1
          %p405 = scmp.gt.s32.totalorder %s404, 0
          %s406 = scalar_select %p405, %s404, 0
          %s407 = smul.u32 2, %s406
          %s409 = ssub.s32 128, 128
          %410 = vsyncadd %s400, %s409
          %s411 = smul.addr %s37, 4
          %s412 = sadd.s32 %s407, %s411
          %s413 = smul.addr %s412, 64
          %s414 = scalar_lea.hbm %s1, %s413
          %s415 = sshll.u32 %s403, 4
          %s416 = int_to_ptr.vmem [resolvable:$true] %s415
          %421 = dma.hbm_to_vmem [thread:$0]  %s414, 128, %s416, %s400, 64, 64, 4
        $region40: #{residual_forward.3} parent=31 // pred_fallthru
          _
        // Predicated region
        $region41: #{residual_forward.3} parent=31 // pred_check
          %p422 = pneg %p132
        $region42: #{residual_forward.3} parent=31 // pred_check_branch
          %424 = sbr.rel (%p422) target = $region44
        $region43: #{residual_forward.3} parent=31 // pred_region
          %s425 = sand.u32 %s30, 1
          %s426 = scalar_lea.sflag [#allocation6], %s425
          %s427 = sand.u32 %s122, 1
          %s428 = smul.addr %s427, 8
          %s429 = scalar_lea.vmem [#allocation7], %s428
          %s430 = sadd.s32 %s38, 1
          %p431 = scmp.lt.s32.totalorder %s430, 1
          %s432 = scalar_select %p431, %s430, 1
          %s433 = smul.u32 2, %s432
          %s435 = ssub.s32 128, 128
          %436 = vsyncadd %s426, %s435
          %s437 = smul.addr %s37, 4
          %s438 = sadd.s32 %s433, %s437
          %s439 = smul.addr %s438, 64
          %s440 = scalar_lea.hbm %s2, %s439
          %s441 = sshll.u32 %s429, 4
          %s442 = int_to_ptr.vmem [resolvable:$true] %s441
          %447 = dma.hbm_to_vmem [thread:$0]  %s440, 128, %s442, %s426, 64, 64, 4
        $region44: #{residual_forward.3} parent=31 // pred_fallthru
          _
      $region32: #{residual_forward.3} parent=5 // pred_fallthru
        _
      %p448 = scmp.le.s32.totalorder 1, %s30
      %p449 = scmp.lt.s32.totalorder %s30, 5
      %p450 = pnand %p448, %p449
      %p451 = pneg %p450
      // Predicated region
      $region45: #{residual_forward.3} parent=5 // pred_check
        _
      $region46: #{residual_forward.3} parent=5 // pred_check_branch
        %453 = sbr.rel (%p450) target = $region48
      $region47: #{residual_forward.3} parent=5 // pred_region
        %s454 = ssub.s32 %s30, 1
        %s455 = sand.u32 %s57, 1
        %s456 = scalar_lea.sflag [#allocation3], %s455
        %s457 = sand.u32 %s57, 1
        %s458 = smul.addr %s457, 8
        %s459 = scalar_lea.vmem [#allocation2], %s458
        // Predicated region
        $region49: #{residual_forward.3} parent=47 // pred_check
          %p460 = pneg %p70
        $region50: #{residual_forward.3} parent=47 // pred_check_branch
          %462 = sbr.rel (%p460) target = $region52
        $region51: #{residual_forward.3} parent=47 // pred_region
          %463 = dma.done %s456, 128
        $region52: #{residual_forward.3} parent=47 // pred_fallthru
          _
        %s464 = sand.u32 %s35, 1
        %s465 = scalar_lea.sflag [#allocation6], %s464
        %s466 = sand.u32 %s91, 1
        %s467 = smul.addr %s466, 8
        %s468 = scalar_lea.vmem [#allocation5], %s467
        // Predicated region
        $region53: #{residual_forward.3} parent=47 // pred_check
          %p469 = pneg %p104
        $region54: #{residual_forward.3} parent=47 // pred_check_branch
          %471 = sbr.rel (%p469) target = $region56
        $region55: #{residual_forward.3} parent=47 // pred_region
          %472 = dma.done %s465, 128
        $region56: #{residual_forward.3} parent=47 // pred_fallthru
          _
        %s473 = sand.u32 %s35, 1
        %s474 = scalar_lea.sflag [#allocation6], %s473
        %s475 = sand.u32 %s125, 1
        %s476 = smul.addr %s475, 8
        %s477 = scalar_lea.vmem [#allocation7], %s476
        // Predicated region
        $region57: #{residual_forward.3} parent=47 // pred_check
          %p478 = pneg %p138
        $region58: #{residual_forward.3} parent=47 // pred_check_branch
          %480 = sbr.rel (%p478) target = $region60
        $region59: #{residual_forward.3} parent=47 // pred_region
          %481 = dma.done %s474, 128
        $region60: #{residual_forward.3} parent=47 // pred_fallthru
          _
        // Predicated region
        $region61: #{residual_forward.3} parent=47 // pred_check
          %p482 = pneg %p159
        $region62: #{residual_forward.3} parent=47 // pred_check_branch
          %484 = sbr.rel (%p482) target = $region64
        $region63: #{residual_forward.3} parent=47 // pred_region
          %485 = dma.done [#allocation9], 3072
        $region64: #{residual_forward.3} parent=47 // pred_fallthru
          _
        // Predicated region
        $region65: #{residual_forward.3} parent=47 // pred_check
          %p486 = pneg %p180
        $region66: #{residual_forward.3} parent=47 // pred_check_branch
          %488 = sbr.rel (%p486) target = $region68
        $region67: #{residual_forward.3} parent=47 // pred_region
          %489 = dma.done [#allocation9], 16
        $region68: #{residual_forward.3} parent=47 // pred_fallthru
          _
        // Predicated region
        $region69: #{residual_forward.3} parent=47 // pred_check
          %p490 = pneg %p201
        $region70: #{residual_forward.3} parent=47 // pred_check_branch
          %492 = sbr.rel (%p490) target = $region72
        $region71: #{residual_forward.3} parent=47 // pred_region
          %493 = dma.done [#allocation12], 1024
        $region72: #{residual_forward.3} parent=47 // pred_fallthru
          _
        // Predicated region
        $region73: #{residual_forward.3} parent=47 // pred_check
          %p494 = pneg %p222
        $region74: #{residual_forward.3} parent=47 // pred_check_branch
          %496 = sbr.rel (%p494) target = $region76
        $region75: #{residual_forward.3} parent=47 // pred_region
          %497 = dma.done [#allocation12], 16
        $region76: #{residual_forward.3} parent=47 // pred_fallthru
          _
        %s498 = sand.u32 %s57, 1
        %s499 = scalar_lea.sflag [#allocation3], %s498
        %s500 = sand.u32 %s57, 1
        %s501 = smul.addr %s500, 8
        %s502 = scalar_lea.vmem [#allocation2], %s501
        %p503 = pneg %p70
        %p504 = pneg %p67
        %s505 = sand.u32 %s35, 1
        %s506 = scalar_lea.sflag [#allocation6], %s505
        %s507 = sand.u32 %s91, 1
        %s508 = smul.addr %s507, 8
        %s509 = scalar_lea.vmem [#allocation5], %s508
        %p510 = pneg %p104
        %p511 = pneg %p101
        %s512 = sand.u32 %s35, 1
        %s513 = scalar_lea.sflag [#allocation6], %s512
        %s514 = sand.u32 %s125, 1
        %s515 = smul.addr %s514, 8
        %s516 = scalar_lea.vmem [#allocation7], %s515
        %p517 = pneg %p138
        %p518 = pneg %p135
        %p519 = pneg %p159
        %p520 = pneg %p156
        %p521 = pneg %p180
        %p522 = pneg %p177
        %p523 = pneg %p201
        %p524 = pneg %p198
        %p525 = pneg %p222
        %p526 = pneg %p219
        %p527 = pneg %p250
        %p528 = pneg %p247
        %s529 = sand.u32 %s237, 1
        %s530 = scalar_lea.sflag [#allocation4], %s529
        %s531 = sand.u32 %s237, 1
        %s532 = smul.addr %s531, 8
        %s533 = scalar_lea.vmem [#allocation14], %s532
        %p534 = pneg %p278
        %p535 = pneg %p275
        %s536 = sand.u32 %s35, 1
        %s537 = scalar_lea.sflag [#allocation16], %s536
        %s538 = sand.u32 %s265, 1
        %s539 = smul.addr %s538, 8
        %s540 = scalar_lea.vmem [#allocation15], %s539
        %p541 = pneg %p306
        %p542 = pneg %p303
        %s543 = sand.u32 %s35, 1
        %s544 = scalar_lea.sflag [#allocation16], %s543
        %s545 = sand.u32 %s293, 1
        %s546 = smul.addr %s545, 8
        %s547 = scalar_lea.vmem [#allocation17], %s546
        %s548 = smul.u32 2, %s40
        %s549 = ssub.s32 %s40, 1
        %p550 = scmp.gt.s32.totalorder %s549, 0
        %s551 = scalar_select %p550, %s549, 0
        %s552 = smul.u32 2, %s551
        %s553 = sadd.s32 %s40, 1
        %p554 = scmp.lt.s32.totalorder %s553, 1
        %s555 = scalar_select %p554, %s553, 1
        %s556 = smul.u32 2, %s555
        %s557 = smul.u32 2, %s40
        %s558 = smul.u32 2, %s40
        %v560 = vld [vmem:[%s459] sm:$0xf]
        %v561 = vld [vmem:[%s459 + $0x4] sm:$0xf]
        %v562 = vld [vmem:[%s468 + $0x4] sm:$0x8]
        %v563 = vunpack.c.l.bf16 %v562
        %p564 = scmp.gt.s32.totalorder %s40, 0
        %s565 = scalar_select %p564, 1, 0
        %v566 = vstv %s565
        %vm567 = vcmp.eq.s32.totalorder %v566, 1
        %v568 = vsel %vm567, %v563, 0.0
        %v569 = vpack.c.bf16 %v568, %v568
        %v571 = vshrl.u32 %v569, 16
        %v573 = vrot.slane %v571, 3
        %v577 = vunpack.c.l.b16 %v560
        %v578 = vunpack.c.l.b16 %v561
        %v579 = vpack.c.b16 %v578, %v577
        %v581 = vshrl.u32 %v579, 16
        %v583 = vrot.slane %v581, 7
        %v584 = vshll.u32 %v579, 16
        %v586 = vor.u32 %v583, %v584
        %vm588 = vcmask 1040384
        %vm589 = vsmask.f32 256
        %vm590 = vmand %vm588, %vm589
        %v591 = vsel %vm590, %v573, %v586
        %v592 = vld [vmem:[%s477] sm:$0x1]
        %v593 = vunpack.c.l.bf16 %v592
        %p594 = scmp.lt.s32.totalorder %s40, 1
        %s595 = scalar_select %p594, 1, 0
        %v596 = vstv %s595
        %vm597 = vcmp.eq.s32.totalorder %v596, 1
        %v598 = vsel %vm597, %v593, 0.0
        %v599 = vpack.c.bf16 %v598, %v598
        %v600 = vrot.slane %v584, 1
        %v601 = vor.u32 %v581, %v600
        %v604 = vshll.u32 %v599, 16
        %v606 = vrot.slane %v604, 1
        %vm608 = vcmask 1047552
        %vm609 = vsmask.f32 7424
        %vm610 = vmand %vm608, %vm609
        %v611 = vsel %vm610, %v601, %v606
        %v613 = vld [vmem:[#allocation8] sm:$0xf]
        %v614 = vld [vmem:[#allocation8 + $0x4] sm:$0xf]
        %v615 = vld [vmem:[#allocation8 + $0x8] sm:$0xf]
        %v616 = vld [vmem:[#allocation8 + $0xc] sm:$0xf]
        %v617 = vld [vmem:[#allocation8 + $0x10] sm:$0xf]
        %v618 = vld [vmem:[#allocation8 + $0x14] sm:$0xf]
        %v619 = vld [vmem:[#allocation8 + $0x18] sm:$0xf]
        %v620 = vld [vmem:[#allocation8 + $0x1c] sm:$0xf]
        %v621 = vld [vmem:[#allocation8 + $0x20] sm:$0xf]
        %v622 = vld [vmem:[#allocation8 + $0x24] sm:$0xf]
        %v623 = vld [vmem:[#allocation8 + $0x28] sm:$0xf]
        %v624 = vld [vmem:[#allocation8 + $0x2c] sm:$0xf]
        %v625 = vld [vmem:[#allocation8 + $0x30] sm:$0xf]
        %v626 = vld [vmem:[#allocation8 + $0x34] sm:$0xf]
        %v627 = vld [vmem:[#allocation8 + $0x38] sm:$0xf]
        %v628 = vld [vmem:[#allocation8 + $0x3c] sm:$0xf]
        %v629 = vld [vmem:[#allocation8 + $0x40] sm:$0xf]
        %v630 = vld [vmem:[#allocation8 + $0x44] sm:$0xf]
        %v631 = vld [vmem:[#allocation8 + $0x48] sm:$0xf]
        %v632 = vld [vmem:[#allocation8 + $0x4c] sm:$0xf]
        %v633 = vld [vmem:[#allocation8 + $0x50] sm:$0xf]
        %v634 = vld [vmem:[#allocation8 + $0x54] sm:$0xf]
        %v635 = vld [vmem:[#allocation8 + $0x58] sm:$0xf]
        %v636 = vld [vmem:[#allocation8 + $0x5c] sm:$0xf]
        %v637 = vld [vmem:[#allocation8 + $0x60] sm:$0xf]
        %v638 = vld [vmem:[#allocation8 + $0x64] sm:$0xf]
        %v639 = vld [vmem:[#allocation8 + $0x68] sm:$0xf]
        %v640 = vld [vmem:[#allocation8 + $0x6c] sm:$0xf]
        %v641 = vld [vmem:[#allocation8 + $0x70] sm:$0xf]
        %v642 = vld [vmem:[#allocation8 + $0x74] sm:$0xf]
        %v643 = vld [vmem:[#allocation8 + $0x78] sm:$0xf]
        %v644 = vld [vmem:[#allocation8 + $0x7c] sm:$0xf]
        %v645 = vld [vmem:[#allocation8 + $0x80] sm:$0xf]
        %v646 = vld [vmem:[#allocation8 + $0x84] sm:$0xf]
        %v647 = vld [vmem:[#allocation8 + $0x88] sm:$0xf]
        %v648 = vld [vmem:[#allocation8 + $0x8c] sm:$0xf]
        %v649 = vld [vmem:[#allocation8 + $0x90] sm:$0xf]
        %v650 = vld [vmem:[#allocation8 + $0x94] sm:$0xf]
        %v651 = vld [vmem:[#allocation8 + $0x98] sm:$0xf]
        %v652 = vld [vmem:[#allocation8 + $0x9c] sm:$0xf]
        %v653 = vld [vmem:[#allocation8 + $0xa0] sm:$0xf]
        %v654 = vld [vmem:[#allocation8 + $0xa4] sm:$0xf]
        %v655 = vld [vmem:[#allocation8 + $0xa8] sm:$0xf]
        %v656 = vld [vmem:[#allocation8 + $0xac] sm:$0xf]
        %v657 = vld [vmem:[#allocation8 + $0xb0] sm:$0xf]
        %v658 = vld [vmem:[#allocation8 + $0xb4] sm:$0xf]
        %v659 = vld [vmem:[#allocation8 + $0xb8] sm:$0xf]
        %v660 = vld [vmem:[#allocation8 + $0xbc] sm:$0xf]
        %v661 = vld [vmem:[#allocation10] sm:$0x1]
        %v663 = vlaneseq
        %v664 = vshrl.u32 %v663, 7
        %v665 = vsub.s32 0, %v664
        %v666 = vrot.slane %v661, %v665
        %v716 = vunpack.c.l.b16 %v613
        %v717 = vunpack.c.l.b16 %v614
        %v718 = vunpack.c.l.b16 %v615
        %v719 = vunpack.c.l.b16 %v616
        %v720 = vunpack.c.l.b16 %v617
        %v721 = vunpack.c.l.b16 %v618
        %v722 = vunpack.c.l.b16 %v619
        %v723 = vunpack.c.l.b16 %v620
        %v724 = vunpack.c.l.b16 %v621
        %v725 = vunpack.c.l.b16 %v622
        %v726 = vunpack.c.l.b16 %v623
        %v727 = vunpack.c.l.b16 %v624
        %v728 = vunpack.c.l.b16 %v625
        %v729 = vunpack.c.l.b16 %v626
        %v730 = vunpack.c.l.b16 %v627
        %v731 = vunpack.c.l.b16 %v628
        %v732 = vunpack.c.l.b16 %v629
        %v733 = vunpack.c.l.b16 %v630
        %v734 = vunpack.c.l.b16 %v631
        %v735 = vunpack.c.l.b16 %v632
        %v736 = vunpack.c.l.b16 %v633
        %v737 = vunpack.c.l.b16 %v634
        %v738 = vunpack.c.l.b16 %v635
        %v739 = vunpack.c.l.b16 %v636
        %v740 = vunpack.c.l.b16 %v637
        %v741 = vunpack.c.l.b16 %v638
        %v742 = vunpack.c.l.b16 %v639
        %v743 = vunpack.c.l.b16 %v640
        %v744 = vunpack.c.l.b16 %v641
        %v745 = vunpack.c.l.b16 %v642
        %v746 = vunpack.c.l.b16 %v643
        %v747 = vunpack.c.l.b16 %v644
        %v748 = vunpack.c.l.b16 %v645
        %v749 = vunpack.c.l.b16 %v646
        %v750 = vunpack.c.l.b16 %v647
        %v751 = vunpack.c.l.b16 %v648
        %v752 = vunpack.c.l.b16 %v649
        %v753 = vunpack.c.l.b16 %v650
        %v754 = vunpack.c.l.b16 %v651
        %v755 = vunpack.c.l.b16 %v652
        %v756 = vunpack.c.l.b16 %v653
        %v757 = vunpack.c.l.b16 %v654
        %v758 = vunpack.c.l.b16 %v655
        %v759 = vunpack.c.l.b16 %v656
        %v760 = vunpack.c.l.b16 %v657
        %v761 = vunpack.c.l.b16 %v658
        %v762 = vunpack.c.l.b16 %v659
        %v763 = vunpack.c.l.b16 %v660
        %v764 = vpack.c.b16 %v717, %v716
        %v765 = vpack.c.b16 %v719, %v718
        %v766 = vpack.c.b16 %v721, %v720
        %v767 = vpack.c.b16 %v723, %v722
        %v768 = vpack.c.b16 %v725, %v724
        %v769 = vpack.c.b16 %v727, %v726
        %v770 = vpack.c.b16 %v729, %v728
        %v771 = vpack.c.b16 %v731, %v730
        %v772 = vpack.c.b16 %v733, %v732
        %v773 = vpack.c.b16 %v735, %v734
        %v774 = vpack.c.b16 %v737, %v736
        %v775 = vpack.c.b16 %v739, %v738
        %v776 = vpack.c.b16 %v741, %v740
        %v777 = vpack.c.b16 %v743, %v742
        %v778 = vpack.c.b16 %v745, %v744
        %v779 = vpack.c.b16 %v747, %v746
        %v780 = vpack.c.b16 %v749, %v748
        %v781 = vpack.c.b16 %v751, %v750
        %v782 = vpack.c.b16 %v753, %v752
        %v783 = vpack.c.b16 %v755, %v754
        %v784 = vpack.c.b16 %v757, %v756
        %v785 = vpack.c.b16 %v759, %v758
        %v786 = vpack.c.b16 %v761, %v760
        %v787 = vpack.c.b16 %v763, %v762
        %812 = vmatprep.subr.bf16.mxu0 0
        %813 = vmatpush1.bf16.msra.mxu0 %v764
        %814 = vmatprep.subr.bf16.mxu0 0
        %815 = vmatpush1.bf16.msra.mxu0 %v765
        %816 = vmatprep.subr.bf16.mxu0 0
        %817 = vmatpush1.bf16.msra.mxu0 %v766
        %818 = vmatprep.subr.bf16.mxu0 0
        %819 = vmatpush1.bf16.msra.mxu0 %v767
        %820 = vmatprep.subr.bf16.mxu0 0
        %821 = vmatpush1.bf16.msra.mxu0 %v768
        %822 = vmatprep.subr.bf16.mxu0 0
        %823 = vmatpush1.bf16.msra.mxu0 %v769
        %824 = vmatprep.subr.bf16.mxu0 0
        %825 = vmatpush1.bf16.msra.mxu0 %v770
        %826 = vmatprep.subr.bf16.mxu0 0
        %827 = vmatpush1.bf16.msra.mxu0 %v771
        %828 = vmatprep.subr.bf16.mxu0 0
        %829 = vmatpush1.bf16.msra.mxu0 %v772
        %830 = vmatprep.subr.bf16.mxu0 0
        %831 = vmatpush1.bf16.msra.mxu0 %v773
        %832 = vmatprep.subr.bf16.mxu0 0
        %833 = vmatpush1.bf16.msra.mxu0 %v774
        %834 = vmatprep.subr.bf16.mxu0 0
        %835 = vmatpush1.bf16.msra.mxu0 %v775
        %836 = vmatprep.subr.bf16.mxu0 0
        %837 = vmatpush1.bf16.msra.mxu0 %v776
        %838 = vmatprep.subr.bf16.mxu0 0
        %839 = vmatpush1.bf16.msra.mxu0 %v777
        %840 = vmatprep.subr.bf16.mxu0 0
        %841 = vmatpush1.bf16.msra.mxu0 %v778
        %842 = vmatprep.subr.bf16.mxu0 0
        %843 = vmatpush1.bf16.msra.mxu0 %v779
        %844 = vmatprep.mubr.bf16.mxu0 %v579
        %845 = vmatmul.mubr.bf16.gmra.mrb[0].mxu0 %v591
        %v846 = vpop.f32.mrb[0].mxu0
        %v847 = vadd.f32 %v666, %v846
        %v848 = vpop.f32.mrb[0].mxu0
        %v849 = vpop.f32.mrb[0].mxu0
        %v850 = vadd.f32 %v666, %v849
        %v851 = vpop.f32.mrb[0].mxu0
        %852 = vdwg.mxu0
        %853 = vmatprep.subr.bf16.mxu0 0
        %854 = vmatpush1.bf16.msra.mxu0 %v780
        %855 = vmatprep.subr.bf16.mxu0 0
        %856 = vmatpush1.bf16.msra.mxu0 %v781
        %857 = vmatprep.subr.bf16.mxu0 0
        %858 = vmatpush1.bf16.msra.mxu0 %v782
        %859 = vmatprep.subr.bf16.mxu0 0
        %860 = vmatpush1.bf16.msra.mxu0 %v783
        %861 = vmatprep.subr.bf16.mxu0 0
        %862 = vmatpush1.bf16.msra.mxu0 %v784
        %863 = vmatprep.subr.bf16.mxu0 0
        %864 = vmatpush1.bf16.msra.mxu0 %v785
        %865 = vmatprep.subr.bf16.mxu0 0
        %866 = vmatpush1.bf16.msra.mxu0 %v786
        %867 = vmatprep.subr.bf16.mxu0 0
        %868 = vmatpush1.bf16.msra.mxu0 %v787
        %869 = vmatprep.subr.bf16.mxu0 0
        %870 = vmatpush1.bf16.msra.mxu0 0
        %871 = vmatprep.subr.bf16.mxu0 0
        %872 = vmatpush1.bf16.msra.mxu0 0
        %873 = vmatprep.subr.bf16.mxu0 0
        %874 = vmatpush1.bf16.msra.mxu0 0
        %875 = vmatprep.subr.bf16.mxu0 0
        %876 = vmatpush1.bf16.msra.mxu0 0
        %877 = vmatprep.subr.bf16.mxu0 0
        %878 = vmatpush1.bf16.msra.mxu0 0
        %879 = vmatprep.subr.bf16.mxu0 0
        %880 = vmatpush1.bf16.msra.mxu0 0
        %881 = vmatprep.subr.bf16.mxu0 0
        %882 = vmatpush1.bf16.msra.mxu0 0
        %883 = vmatprep.subr.bf16.mxu0 0
        %884 = vmatpush1.bf16.msra.mxu0 0
        %885 = vmatprep.mubr.bf16.mxu0 0
        %886 = vmatmul.mubr.bf16.gmra.mrb[0].mxu0 %v611
        %v887 = vpop.f32.mrb[0].mxu0
        %v888 = vadd.f32 %v847, %v887
        %v889 = vpop.f32.mrb[0].mxu0
        %v890 = vpop.f32.mrb[0].mxu0
        %v891 = vadd.f32 %v850, %v890
        %v892 = vpop.f32.mrb[0].mxu0
        %893 = vdwg.mxu0
        %v894 = vpack.c.bf16 %v891, %v888
        %v896 = vunpack.c.l.b16 %v894
        %v897 = vunpack.c.h.b16 %v894
        %v898 = vpack.c.b16 %v896, %v896
        %v899 = vpack.c.b16 %v897, %v897
        %902 = vst [vmem:[%s533] sm:$0xf] %v898
        %903 = vst [vmem:[%s533 + $0x4] sm:$0xf] %v899
        %v904 = vld [vmem:[#allocation11] sm:$0xf]
        %v905 = vld [vmem:[#allocation11 + $0x4] sm:$0xf]
        %v906 = vld [vmem:[#allocation11 + $0x8] sm:$0xf]
        %v907 = vld [vmem:[#allocation11 + $0xc] sm:$0xf]
        %v908 = vld [vmem:[#allocation11 + $0x10] sm:$0xf]
        %v909 = vld [vmem:[#allocation11 + $0x14] sm:$0xf]
        %v910 = vld [vmem:[#allocation11 + $0x18] sm:$0xf]
        %v911 = vld [vmem:[#allocation11 + $0x1c] sm:$0xf]
        %v912 = vld [vmem:[#allocation11 + $0x20] sm:$0xf]
        %v913 = vld [vmem:[#allocation11 + $0x24] sm:$0xf]
        %v914 = vld [vmem:[#allocation11 + $0x28] sm:$0xf]
        %v915 = vld [vmem:[#allocation11 + $0x2c] sm:$0xf]
        %v916 = vld [vmem:[#allocation11 + $0x30] sm:$0xf]
        %v917 = vld [vmem:[#allocation11 + $0x34] sm:$0xf]
        %v918 = vld [vmem:[#allocation11 + $0x38] sm:$0xf]
        %v919 = vld [vmem:[#allocation11 + $0x3c] sm:$0xf]
        %v920 = vld [vmem:[#allocation13] sm:$0x1]
        %v922 = vlaneseq
        %v923 = vshrl.u32 %v922, 7
        %v924 = vsub.s32 0, %v923
        %v925 = vrot.slane %v920, %v924
        %v943 = vunpack.c.l.b16 %v904
        %v944 = vunpack.c.l.b16 %v905
        %v945 = vunpack.c.l.b16 %v906
        %v946 = vunpack.c.l.b16 %v907
        %v947 = vunpack.c.l.b16 %v908
        %v948 = vunpack.c.l.b16 %v909
        %v949 = vunpack.c.l.b16 %v910
        %v950 = vunpack.c.l.b16 %v911
        %v951 = vunpack.c.l.b16 %v912
        %v952 = vunpack.c.l.b16 %v913
        %v953 = vunpack.c.l.b16 %v914
        %v954 = vunpack.c.l.b16 %v915
        %v955 = vunpack.c.l.b16 %v916
        %v956 = vunpack.c.l.b16 %v917
        %v957 = vunpack.c.l.b16 %v918
        %v958 = vunpack.c.l.b16 %v919
        %v959 = vpack.c.b16 %v944, %v943
        %v960 = vpack.c.b16 %v946, %v945
        %v961 = vpack.c.b16 %v948, %v947
        %v962 = vpack.c.b16 %v950, %v949
        %v963 = vpack.c.b16 %v952, %v951
        %v964 = vpack.c.b16 %v954, %v953
        %v965 = vpack.c.b16 %v956, %v955
        %v966 = vpack.c.b16 %v958, %v957
        %975 = vmatprep.subr.bf16.mxu0 0
        %976 = vmatpush1.bf16.msra.mxu0 %v959
        %977 = vmatprep.subr.bf16.mxu0 0
        %978 = vmatpush1.bf16.msra.mxu0 %v960
        %979 = vmatprep.subr.bf16.mxu0 0
        %980 = vmatpush1.bf16.msra.mxu0 %v961
        %981 = vmatprep.subr.bf16.mxu0 0
        %982 = vmatpush1.bf16.msra.mxu0 %v962
        %983 = vmatprep.subr.bf16.mxu0 0
        %984 = vmatpush1.bf16.msra.mxu0 %v963
        %985 = vmatprep.subr.bf16.mxu0 0
        %986 = vmatpush1.bf16.msra.mxu0 %v964
        %987 = vmatprep.subr.bf16.mxu0 0
        %988 = vmatpush1.bf16.msra.mxu0 %v965
        %989 = vmatprep.subr.bf16.mxu0 0
        %990 = vmatpush1.bf16.msra.mxu0 %v966
        %991 = vmatprep.subr.bf16.mxu0 0
        %992 = vmatpush1.bf16.msra.mxu0 0
        %993 = vmatprep.subr.bf16.mxu0 0
        %994 = vmatpush1.bf16.msra.mxu0 0
        %995 = vmatprep.subr.bf16.mxu0 0
        %996 = vmatpush1.bf16.msra.mxu0 0
        %997 = vmatprep.subr.bf16.mxu0 0
        %998 = vmatpush1.bf16.msra.mxu0 0
        %999 = vmatprep.subr.bf16.mxu0 0
        %1000 = vmatpush1.bf16.msra.mxu0 0
        %1001 = vmatprep.subr.bf16.mxu0 0
        %1002 = vmatpush1.bf16.msra.mxu0 0
        %1003 = vmatprep.subr.bf16.mxu0 0
        %1004 = vmatpush1.bf16.msra.mxu0 0
        %1005 = vmatprep.subr.bf16.mxu0 0
        %1006 = vmatpush1.bf16.msra.mxu0 0
        %1007 = vmatprep.mubr.bf16.mxu0 0
        %1008 = vmatmul.mubr.bf16.gmra.mrb[0].mxu0 %v579
        %v1009 = vpop.f32.mrb[0].mxu0
        %v1010 = vadd.f32 %v925, %v1009
        %v1011 = vpop.f32.mrb[0].mxu0
        %v1012 = vpop.f32.mrb[0].mxu0
        %v1013 = vadd.f32 %v925, %v1012
        %v1014 = vpop.f32.mrb[0].mxu0
        %1015 = vdwg.mxu0
        %v1016 = vpack.c.bf16 %v1013, %v1010
        %v1018 = vunpack.c.l.b16 %v1016
        %v1019 = vunpack.c.h.b16 %v1016
        %v1020 = vpack.c.b16 %v1018, %v1018
        %v1021 = vpack.c.b16 %v1019, %v1019
        %1024 = vst [vmem:[%s540] sm:$0xf] %v1020
        %1025 = vst [vmem:[%s540 + $0x4] sm:$0xf] %v1021
        %v1026 = vadd.f32 %v888, %v891
        %v1027 = vrot.slane %v1026, 4
        %v1028 = vadd.f32 %v1026, %v1027
        %v1029 = vrot.slane %v1028, 2
        %v1030 = vadd.f32 %v1028, %v1029
        %v1031 = vrot.slane %v1030, 1
        %v1032 = vadd.f32 %v1030, %v1031
        %v1033 = vmul.f32 %v888, %v888
        %v1034 = vmul.f32 %v891, %v891
        %v1035 = vadd.f32 %v1033, %v1034
        %v1036 = vrot.slane %v1035, 4
        %v1037 = vadd.f32 %v1035, %v1036
        %v1038 = vrot.slane %v1037, 2
        %v1039 = vadd.f32 %v1037, %v1038
        %v1040 = vrot.slane %v1039, 1
        %v1041 = vadd.f32 %v1039, %v1040
        %vm1042 = vcmask 1040384
        %v1043 = vsel %vm1042, %v1032, %v1041
        %vm1044 = vcmask 1041408
        %v1045 = vsel %vm1044, %v1043, 0.0
        %1046 = vst [vmem:[%s547] sm:$0xff] %v1045
        %s1047 = sand.u32 %s237, 1
        %s1048 = scalar_lea.sflag [#allocation4], %s1047
        %s1049 = sand.u32 %s237, 1
        %s1050 = smul.addr %s1049, 8
        %s1051 = scalar_lea.vmem [#allocation14], %s1050
        %s1052 = sand.u32 %s35, 1
        %s1053 = scalar_lea.sflag [#allocation16], %s1052
        %s1054 = sand.u32 %s265, 1
        %s1055 = smul.addr %s1054, 8
        %s1056 = scalar_lea.vmem [#allocation15], %s1055
        %s1057 = sand.u32 %s35, 1
        %s1058 = scalar_lea.sflag [#allocation16], %s1057
        %s1059 = sand.u32 %s293, 1
        %s1060 = smul.addr %s1059, 8
        %s1061 = scalar_lea.vmem [#allocation17], %s1060
        // Predicated region
        $region77: #{residual_forward.3} parent=47 // pred_check
          %p1062 = pneg %p247
        $region78: #{residual_forward.3} parent=47 // pred_check_branch
          %1064 = sbr.rel (%p1062) target = $region80
        $region79: #{residual_forward.3} parent=47 // pred_region
          %s1065 = smul.u32 2, %s40
          %s1067 = ssub.s32 128, 128
          %1068 = vsyncadd %s1048, %s1067
          %s1069 = smul.addr %s39, 4
          %s1070 = sadd.s32 %s1065, %s1069
          %s1071 = smul.addr %s1070, 64
          %s1072 = scalar_lea.hbm %s7, %s1071
          %s1073 = sshll.u32 %s1051, 4
          %s1074 = int_to_ptr.vmem [resolvable:$true] %s1073
          %1079 = dma.vmem_to_hbm [thread:$0]  %s1074, 128, %s1072, %s1048, 64, 64, 4
        $region80: #{residual_forward.3} parent=47 // pred_fallthru
          _
        // Predicated region
        $region81: #{residual_forward.3} parent=47 // pred_check
          %p1080 = pneg %p275
        $region82: #{residual_forward.3} parent=47 // pred_check_branch
          %1082 = sbr.rel (%p1080) target = $region84
        $region83: #{residual_forward.3} parent=47 // pred_region
          %s1083 = smul.u32 2, %s40
          %s1085 = ssub.s32 128, 128
          %1086 = vsyncadd %s1053, %s1085
          %s1087 = smul.addr %s39, 4
          %s1088 = sadd.s32 %s1083, %s1087
          %s1089 = smul.addr %s1088, 64
          %s1090 = scalar_lea.hbm %s8, %s1089
          %s1091 = sshll.u32 %s1056, 4
          %s1092 = int_to_ptr.vmem [resolvable:$true] %s1091
          %1097 = dma.vmem_to_hbm [thread:$0]  %s1092, 128, %s1090, %s1053, 64, 64, 4
        $region84: #{residual_forward.3} parent=47 // pred_fallthru
          _
        // Predicated region
        $region85: #{residual_forward.3} parent=47 // pred_check
          %p1098 = pneg %p303
        $region86: #{residual_forward.3} parent=47 // pred_check_branch
          %1100 = sbr.rel (%p1098) target = $region88
        $region87: #{residual_forward.3} parent=47 // pred_region
          %s1102 = ssub.s32 128, 128
          %1103 = vsyncadd %s1058, %s1102
          %s1104 = smul.addr %s39, 2
          %s1105 = sadd.s32 %s40, %s1104
          %s1106 = smul.addr %s1105, 128
          %s1107 = scalar_lea.hbm %s9, %s1106
          %s1109 = sshll.u32 %s1061, 4
          %s1110 = int_to_ptr.vmem [resolvable:$true] %s1109
          %1112 = dma.vmem_to_hbm [thread:$0]  %s1110, 128, %s1107, %s1058
        $region88: #{residual_forward.3} parent=47 // pred_fallthru
          _
      $region48: #{residual_forward.3} parent=5 // pred_fallthru
        _
      %p1113 = scmp.le.s32.totalorder 2, %s30
      // Predicated region
      $region89: #{residual_forward.3} parent=5 // pred_check
        %p1114 = pneg %p1113
      $region90: #{residual_forward.3} parent=5 // pred_check_branch
        %1116 = sbr.rel (%p1114) target = $region92
      $region91: #{residual_forward.3} parent=5 // pred_region
        %s1117 = ssub.s32 %s30, 2
        // Predicated region
        $region93: #{residual_forward.3} parent=91 // pred_check
          %p1118 = pneg %p253
        $region94: #{residual_forward.3} parent=91 // pred_check_branch
          %1120 = sbr.rel (%p1118) target = $region96
        $region95: #{residual_forward.3} parent=91 // pred_region
          %s1121 = sand.u32 %s238, 1
          %s1122 = scalar_lea.sflag [#allocation4], %s1121
          %s1123 = sand.u32 %s238, 1
          %s1124 = smul.addr %s1123, 8
          %s1125 = scalar_lea.vmem [#allocation14], %s1124
          %1126 = dma.done %s1122, 128
        $region96: #{residual_forward.3} parent=91 // pred_fallthru
          _
        // Predicated region
        $region97: #{residual_forward.3} parent=91 // pred_check
          %p1127 = pneg %p281
        $region98: #{residual_forward.3} parent=91 // pred_check_branch
          %1129 = sbr.rel (%p1127) target = $region100
        $region99: #{residual_forward.3} parent=91 // pred_region
          %s1130 = sand.u32 %s36, 1
          %s1131 = scalar_lea.sflag [#allocation16], %s1130
          %s1132 = sand.u32 %s266, 1
          %s1133 = smul.addr %s1132, 8
          %s1134 = scalar_lea.vmem [#allocation15], %s1133
          %1135 = dma.done %s1131, 128
        $region100: #{residual_forward.3} parent=91 // pred_fallthru
          _
        // Predicated region
        $region101: #{residual_forward.3} parent=91 // pred_check
          %p1136 = pneg %p309
        $region102: #{residual_forward.3} parent=91 // pred_check_branch
          %1138 = sbr.rel (%p1136) target = $region104
        $region103: #{residual_forward.3} parent=91 // pred_region
          %s1139 = sand.u32 %s36, 1
          %s1140 = scalar_lea.sflag [#allocation16], %s1139
          %s1141 = sand.u32 %s294, 1
          %s1142 = smul.addr %s1141, 8
          %s1143 = scalar_lea.vmem [#allocation17], %s1142
          %1144 = dma.done %s1140, 128
        $region104: #{residual_forward.3} parent=91 // pred_fallthru
          _
      $region92: #{residual_forward.3} parent=5 // pred_fallthru
        _
    $region6: #{residual_forward.3} parent=1 // loop_footer
      %s34 = sadd.s32 1, %s30
    $region7: #{residual_forward.3} parent=1 // loop_footer_branch
      %29 = sbr.rel target = $region3
    $region8: #{residual_forward.3} parent=1 // loop_exit
      _
    %1145 = vsyncpa [#allocation3], 1
    %s1146 = scalar_lea.sflag [#allocation3], 1
    %1147 = vsyncpa %s1146, 1
    %1148 = vsyncpa [#allocation6], 1
    %s1149 = scalar_lea.sflag [#allocation6], 1
    %1150 = vsyncpa %s1149, 1
    %1151 = vsyncpa [#allocation9], 1
    %1152 = vsyncpa [#allocation12], 1
    %1153 = vsyncpa [#allocation4], 1
    %s1154 = scalar_lea.sflag [#allocation4], 1
    %1155 = vsyncpa %s1154, 1
    %1156 = vsyncpa [#allocation16], 1
    %s1157 = scalar_lea.sflag [#allocation16], 1
    %1158 = vsyncpa %s1157, 1

</llo_original>
